<compile_context>
chip_gen: v5e
topology: v5e:2x2
jax: 0.10.0
libtpu: 0.0.40
codegen_flags: <defaults>
</compile_context>

<pallas_src>
import functools

import jax
import jax.numpy as jnp
from jax.experimental import pallas as pl
from jax.experimental.pallas import tpu as pltpu


# ---------------------------------------------------------------------------
# Fused Pallas kernel: entire forward pass, all weights VMEM-resident.
# ---------------------------------------------------------------------------
def _fused_forward_kernel(*refs, ls_kinds, bias_offs, bias_lens):
    x_ref, bias_ref = refs[0], refs[1]
    out_ref = refs[-1]
    w_refs = refs[2:-1]

    widx = 0
    bidx = 0

    def next_w():
        nonlocal widx
        r = w_refs[widx]
        widx += 1
        return r[...]                        # bf16 weight tile

    def next_b():
        nonlocal bidx
        off, n = bias_offs[bidx], bias_lens[bidx]
        bidx += 1
        return bias_ref[:, off:off + n]      # (1, n) f32, 128-lane aligned

    def leaky(y):                            # F.leaky_relu, slope 0.01 (f32)
        return jnp.where(y >= 0, y, 0.01 * y)

    def gelu(z):                             # tanh-approx GELU -> EUP slot
        c = 0.7978845608028654               # sqrt(2/pi)
        return 0.5 * z * (1.0 + jnp.tanh(c * (z + 0.044715 * z * z * z)))

    def lin(h, wm, bv):                      # bf16 MXU matmul, f32 accumulate
        y = jnp.dot(h.astype(jnp.bfloat16), wm,
                    preferred_element_type=jnp.float32)
        return y + bv

    h = x_ref[...].astype(jnp.float32)       # (TB, F)

    # l1_bn + l1 + leaky_relu ; dropout(0.1) -> identity in eval mode.
    h = leaky(lin(h, next_w(), next_b()))

    # Trunk: ResidualBlock / LeakyReLULayer sequence (BN folded into W/b).
    for kind in ls_kinds:
        if kind == "res":
            m = leaky(lin(h, next_w(), next_b()))          # layer1
            m = leaky(lin(m, next_w(), next_b()))          # layer2
            h = h + leaky(lin(m, next_w(), next_b()))      # x += layer3(...)
            a = lin(h, next_w(), next_b())                 # GEGLU value half
            g = lin(h, next_w(), next_b())                 # GEGLU gate half
            h = a * gelu(g)
        else:                                              # LeakyReLULayer
            h = leaky(lin(h, next_w(), next_b()))

    # All heads fused: one lane-dense (32, G*64) GEGLU pair -> (TB, G*64).
    a = lin(h, next_w(), next_b())
    g = lin(h, next_w(), next_b())
    s = a * gelu(g)

    # Block-diagonal sub layers; final layer emits (TB, num_outputs) directly
    # (dropout(0.2) before the last layer is identity in eval mode).
    while widx < len(w_refs):
        s = leaky(lin(s, next_w(), next_b()))

    out_ref[...] = s.astype(out_ref.dtype)


@functools.partial(jax.jit,
                   static_argnames=("ls_kinds", "bias_offs", "bias_lens",
                                    "num_outputs", "block_b"))
def _fused_call(x, bias_buf, weights, *, ls_kinds, bias_offs, bias_lens,
                num_outputs, block_b):
    B, F = x.shape
    grid = (B // block_b,)
    kernel = functools.partial(_fused_forward_kernel, ls_kinds=ls_kinds,
                               bias_offs=bias_offs, bias_lens=bias_lens)
    in_specs = [pl.BlockSpec((block_b, F), lambda i: (i, 0)),
                pl.BlockSpec(bias_buf.shape, lambda i: (0, 0))]
    in_specs += [pl.BlockSpec(w.shape, lambda i: (0, 0)) for w in weights]
    out_spec = pl.BlockSpec((block_b, num_outputs), lambda i: (i, 0))
    return pl.pallas_call(
        kernel,
        grid=grid,
        in_specs=in_specs,
        out_specs=out_spec,
        out_shape=jax.ShapeDtypeStruct((B, num_outputs), jnp.float32),
        compiler_params=pltpu.CompilerParams(
            dimension_semantics=("parallel",)),
    )(x, bias_buf, *weights)


# ---------------------------------------------------------------------------
# Parameter construction: BN folded (f32) -> bf16 weights, fused/block-diag
# head weights, all biases packed into one lane-aligned f32 buffer.
# ---------------------------------------------------------------------------
def _init_folded_linear(key, g, din, dout):
    """BatchNorm1d(din) (eval stats) + Linear(din, dout), BN folded into W/b."""
    ks = jax.random.split(key, 6)
    gamma = 1.0 + 0.05 * jax.random.normal(ks[0], (g, 1, din), jnp.float32)
    beta = 0.05 * jax.random.normal(ks[1], (g, 1, din), jnp.float32)
    rmean = 0.05 * jax.random.normal(ks[2], (g, 1, din), jnp.float32)
    rvar = 1.0 + 0.05 * jnp.abs(jax.random.normal(ks[3], (g, 1, din), jnp.float32))
    W = jax.random.normal(ks[4], (g, din, dout), jnp.float32) / jnp.sqrt(float(din))
    b = 0.05 * jax.random.normal(ks[5], (g, 1, dout), jnp.float32)
    eps = 1e-5
    scale = gamma * jax.lax.rsqrt(rvar + eps)              # (g, 1, din)
    shift = beta - rmean * scale                           # (g, 1, din)
    Wf = W * jnp.transpose(scale, (0, 2, 1))               # fold into weights
    bf = b + jnp.einsum("gxd,gdo->gxo", shift, W)          # fold into bias
    return Wf, bf


def _fuse_heads_geglu(W, b):
    """(G, din, 2h) packed GEGLU stack -> lane-dense (din, G*h) Wa/Wg pair."""
    G, din, two_h = W.shape
    h = two_h // 2
    Wa, Wg = W[..., :h], W[..., h:]
    ba, bg = b[..., :h], b[..., h:]
    cat = lambda w_: jnp.transpose(w_, (1, 0, 2)).reshape(din, G * h)
    catb = lambda b_: jnp.transpose(b_, (1, 0, 2)).reshape(1, G * h)
    return cat(Wa), catb(ba), cat(Wg), catb(bg)


def _block_diag(W, b):
    """Stacked per-head (G, di, do) weights -> block-diagonal (G*di, G*do)."""
    G, di, do = W.shape
    Wb = jnp.zeros((G * di, G * do), W.dtype)
    for gi in range(G):
        Wb = Wb.at[gi * di:(gi + 1) * di, gi * do:(gi + 1) * do].set(W[gi])
    bb = jnp.reshape(b, (1, G * do))
    return Wb, bb


def _pack_biases(biases):
    """Pack all (1, n) f32 biases into one buffer at 128-lane-aligned offsets."""
    offs, lens, cur = [], [], 0
    for b in biases:
        n = int(b.shape[-1])
        offs.append(cur)
        lens.append(n)
        cur += ((n + 127) // 128) * 128
    buf = jnp.zeros((1, cur), jnp.float32)
    for b, off in zip(biases, offs):
        buf = buf.at[:, off:off + b.shape[-1]].set(b)
    return buf, tuple(offs), tuple(lens)


def init_params(key, num_features=10, num_outputs=10,
                units=(128, 256, 128, 64, 32), units_sub=(64, 16, 32, 16, 1)):
    u = [num_features] + list(units)           # [10, 128, 256, 128, 64, 32]
    keys = iter(jax.random.split(key, 64))

    weights, biases, ls_kinds = [], [], []

    def add(Wf, bf):
        weights.append(Wf.astype(jnp.bfloat16))        # bf16 weight for MXU
        biases.append(bf.reshape(1, -1).astype(jnp.float32))

    def trunk_lin(din, dout):
        Wf, bf = _init_folded_linear(next(keys), 1, din, dout)
        add(Wf[0], bf[0])

    # l1_bn + l1
    trunk_lin(u[0], u[1])

    # ls: i even -> ResidualBlock(u[i+1], u[i+2]); i odd -> LeakyReLULayer
    for i in range(len(u) - 2):
        din, dout = u[i + 1], u[i + 2]
        if i % 2 == 1:
            ls_kinds.append("leaky")
            trunk_lin(din, dout)
        else:
            ls_kinds.append("res")
            trunk_lin(din, 32)                          # layer1
            trunk_lin(32, 16)                           # layer2
            trunk_lin(16, din)                          # layer3
            Wg_, bg_ = _init_folded_linear(next(keys), 1, din, 2 * dout)
            add(Wg_[0, :, :dout], bg_[0, :, :dout])     # GEGLU value half
            add(Wg_[0, :, dout:], bg_[0, :, dout:])     # GEGLU gate half

    # Heads: num_outputs x MultiOutputsModelSub(u[-1]).
    su = [u[-1]] + list(units_sub)                      # [32, 64, 16, 32, 16, 1]
    Whg, bhg = _init_folded_linear(next(keys), num_outputs, su[0], 2 * su[1])
    hwa, hba, hwg, hbg = _fuse_heads_geglu(Whg, bhg)    # (32, G*64) each
    add(hwa, hba)
    add(hwg, hbg)

    # Sub LeakyReLU layers -> 4 block-diagonal matmuls; the last one is
    # (G*16, G) so the (B, num_outputs) output needs no concat/assembly.
    # NOTE: the SigmoidLayer branch in the reference is unreachable, so every
    # ls_sub layer (including the final 16 -> 1) is a LeakyReLULayer.
    for i in range(len(units_sub) - 1):
        Ws, bs = _init_folded_linear(next(keys), num_outputs,
                                     su[i + 1], su[i + 2])
        Wb, bb = _block_diag(Ws, bs)
        add(Wb, bb)

    bias_buf, bias_offs, bias_lens = _pack_biases(biases)

    return {
        "weights": tuple(weights),
        "bias_buf": bias_buf,
        "bias_offs": bias_offs,
        "bias_lens": bias_lens,
        "ls_kinds": tuple(ls_kinds),
        "num_outputs": num_outputs,
        "num_features": num_features,
    }


def each_saint_forward(params, x):
    """x: (B, num_features) -> (B, num_outputs); eval-mode forward."""
    B = x.shape[0]
    # Batch tile: multiple of 8 sublanes, capped at 512 so the widest
    # (TB, 640) f32 activation plus ~0.8 MB of resident bf16 weights stays
    # well inside v7x's 64 MiB VMEM; the batch grid axis is "parallel" so
    # large batches pipeline and shard across v7x's two TensorCores.
    block_b = min(512, ((B + 7) // 8) * 8)
    Bp = ((B + block_b - 1) // block_b) * block_b
    xf = x.astype(jnp.float32)
    if Bp != B:
        xf = jnp.pad(xf, ((0, Bp - B), (0, 0)))
    out = _fused_call(xf, params["bias_buf"], params["weights"],
                      ls_kinds=params["ls_kinds"],
                      bias_offs=params["bias_offs"],
                      bias_lens=params["bias_lens"],
                      num_outputs=params["num_outputs"],
                      block_b=block_b)
    return out[:B] if Bp != B else out


if __name__ == "__main__":
    key = jax.random.PRNGKey(0)
    kp, kx = jax.random.split(key)

    NUM_FEATURES = 10
    NUM_OUTPUTS = 10
    BATCH = 8

    params = init_params(kp, num_features=NUM_FEATURES, num_outputs=NUM_OUTPUTS)
    x = jax.random.normal(kx, (BATCH, NUM_FEATURES), jnp.float32)

    out = each_saint_forward(params, x)
    out = jax.block_until_ready(out)

    assert out.shape == (BATCH, NUM_OUTPUTS), out.shape
    assert out.dtype == jnp.float32
    assert bool(jnp.all(jnp.isfinite(out)))
    print("KERNEL_OK")
</pallas_src>

<mosaic_0001>
module attributes {stable_mosaic.version = 11 : i64} {
  func.func @_fused_forward_kernel(%arg0: i32, %arg1: memref<8x10xf32, #tpu.memory_space<vmem>>, %arg2: memref<1x4224xf32, #tpu.memory_space<vmem>>, %arg3: memref<10x128xbf16, #tpu.memory_space<vmem>>, %arg4: memref<128x32xbf16, #tpu.memory_space<vmem>>, %arg5: memref<32x16xbf16, #tpu.memory_space<vmem>>, %arg6: memref<16x128xbf16, #tpu.memory_space<vmem>>, %arg7: memref<128x256xbf16, #tpu.memory_space<vmem>>, %arg8: memref<128x256xbf16, #tpu.memory_space<vmem>>, %arg9: memref<256x128xbf16, #tpu.memory_space<vmem>>, %arg10: memref<128x32xbf16, #tpu.memory_space<vmem>>, %arg11: memref<32x16xbf16, #tpu.memory_space<vmem>>, %arg12: memref<16x128xbf16, #tpu.memory_space<vmem>>, %arg13: memref<128x64xbf16, #tpu.memory_space<vmem>>, %arg14: memref<128x64xbf16, #tpu.memory_space<vmem>>, %arg15: memref<64x32xbf16, #tpu.memory_space<vmem>>, %arg16: memref<32x640xbf16, #tpu.memory_space<vmem>>, %arg17: memref<32x640xbf16, #tpu.memory_space<vmem>>, %arg18: memref<640x160xbf16, #tpu.memory_space<vmem>>, %arg19: memref<160x320xbf16, #tpu.memory_space<vmem>>, %arg20: memref<320x160xbf16, #tpu.memory_space<vmem>>, %arg21: memref<160x10xbf16, #tpu.memory_space<vmem>>, %arg22: memref<8x10xf32, #tpu.memory_space<vmem>>) attributes {dimension_semantics = [#tpu.dimension_semantics<parallel>], iteration_bounds = array<i64: 1>, scalar_prefetch = 0 : i64, scratch_operands = 0 : i64, tpu.core_type = #tpu.core_type<tc>, window_params = [{transform_indices = @transform_0, window_bounds = array<i64: 8, 10>}, {pipeline_mode = #tpu.pipeline_mode<synchronous>, transform_indices = @transform_1, window_bounds = array<i64: 1, 4224>}, {pipeline_mode = #tpu.pipeline_mode<synchronous>, transform_indices = @transform_2, window_bounds = array<i64: 10, 128>}, {pipeline_mode = #tpu.pipeline_mode<synchronous>, transform_indices = @transform_3, window_bounds = array<i64: 128, 32>}, {pipeline_mode = #tpu.pipeline_mode<synchronous>, transform_indices = @transform_4, window_bounds = array<i64: 32, 16>}, {pipeline_mode = #tpu.pipeline_mode<synchronous>, transform_indices = @transform_5, window_bounds = array<i64: 16, 128>}, {pipeline_mode = #tpu.pipeline_mode<synchronous>, transform_indices = @transform_6, window_bounds = array<i64: 128, 256>}, {pipeline_mode = #tpu.pipeline_mode<synchronous>, transform_indices = @transform_7, window_bounds = array<i64: 128, 256>}, {pipeline_mode = #tpu.pipeline_mode<synchronous>, transform_indices = @transform_8, window_bounds = array<i64: 256, 128>}, {pipeline_mode = #tpu.pipeline_mode<synchronous>, transform_indices = @transform_9, window_bounds = array<i64: 128, 32>}, {pipeline_mode = #tpu.pipeline_mode<synchronous>, transform_indices = @transform_10, window_bounds = array<i64: 32, 16>}, {pipeline_mode = #tpu.pipeline_mode<synchronous>, transform_indices = @transform_11, window_bounds = array<i64: 16, 128>}, {pipeline_mode = #tpu.pipeline_mode<synchronous>, transform_indices = @transform_12, window_bounds = array<i64: 128, 64>}, {pipeline_mode = #tpu.pipeline_mode<synchronous>, transform_indices = @transform_13, window_bounds = array<i64: 128, 64>}, {pipeline_mode = #tpu.pipeline_mode<synchronous>, transform_indices = @transform_14, window_bounds = array<i64: 64, 32>}, {pipeline_mode = #tpu.pipeline_mode<synchronous>, transform_indices = @transform_15, window_bounds = array<i64: 32, 640>}, {pipeline_mode = #tpu.pipeline_mode<synchronous>, transform_indices = @transform_16, window_bounds = array<i64: 32, 640>}, {pipeline_mode = #tpu.pipeline_mode<synchronous>, transform_indices = @transform_17, window_bounds = array<i64: 640, 160>}, {pipeline_mode = #tpu.pipeline_mode<synchronous>, transform_indices = @transform_18, window_bounds = array<i64: 160, 320>}, {pipeline_mode = #tpu.pipeline_mode<synchronous>, transform_indices = @transform_19, window_bounds = array<i64: 320, 160>}, {pipeline_mode = #tpu.pipeline_mode<synchronous>, transform_indices = @transform_20, window_bounds = array<i64: 160, 10>}, {transform_indices = @transform_21, window_bounds = array<i64: 8, 10>}]} {
    %c0 = arith.constant 0 : index
    %c0_0 = arith.constant 0 : index
    %0 = vector.load %arg1[%c0, %c0_0] : memref<8x10xf32, #tpu.memory_space<vmem>>, vector<8x10xf32>
    %c0_1 = arith.constant 0 : index
    %c0_2 = arith.constant 0 : index
    %1 = vector.load %arg3[%c0_1, %c0_2] : memref<10x128xbf16, #tpu.memory_space<vmem>>, vector<10x128xbf16>
    %c0_3 = arith.constant 0 : index
    %c0_4 = arith.constant 0 : index
    %2 = vector.load %arg2[%c0_3, %c0_4] : memref<1x4224xf32, #tpu.memory_space<vmem>>, vector<1x128xf32>
    %3 = arith.truncf %0 : vector<8x10xf32> to vector<8x10xbf16>
    %cst = arith.constant dense<0.000000e+00> : vector<8x128xf32>
    %4 = tpu.matmul %3, %1, %cst {dimension_numbers = #tpu.dot_dimension_numbers<[1], [0], [0], [1], [0, 0, 1, 1], [], []>} : vector<8x10xbf16>, vector<10x128xbf16>, vector<8x128xf32> -> vector<8x128xf32>
    %5 = vector.broadcast %2 : vector<1x128xf32> to vector<8x128xf32>
    %6 = arith.addf %4, %5 : vector<8x128xf32>
    %cst_5 = arith.constant 0.000000e+00 : f32
    %7 = vector.broadcast %cst_5 : f32 to vector<8x128xf32>
    %8 = arith.cmpf oge, %6, %7 : vector<8x128xf32>
    %cst_6 = arith.constant 0.00999999977 : f32
    %9 = vector.broadcast %cst_6 : f32 to vector<8x128xf32>
    %10 = arith.mulf %9, %6 : vector<8x128xf32>
    %11 = arith.select %8, %6, %10 : vector<8x128xi1>, vector<8x128xf32>
    %c0_7 = arith.constant 0 : index
    %c0_8 = arith.constant 0 : index
    %12 = vector.load %arg4[%c0_7, %c0_8] : memref<128x32xbf16, #tpu.memory_space<vmem>>, vector<128x32xbf16>
    %c0_9 = arith.constant 0 : index
    %c128 = arith.constant 128 : index
    %13 = vector.load %arg2[%c0_9, %c128] : memref<1x4224xf32, #tpu.memory_space<vmem>>, vector<1x32xf32>
    %14 = arith.truncf %11 : vector<8x128xf32> to vector<8x128xbf16>
    %cst_10 = arith.constant dense<0.000000e+00> : vector<8x32xf32>
    %15 = tpu.matmul %14, %12, %cst_10 {dimension_numbers = #tpu.dot_dimension_numbers<[1], [0], [0], [1], [0, 0, 1, 1], [], []>} : vector<8x128xbf16>, vector<128x32xbf16>, vector<8x32xf32> -> vector<8x32xf32>
    %16 = vector.broadcast %13 : vector<1x32xf32> to vector<8x32xf32>
    %17 = arith.addf %15, %16 : vector<8x32xf32>
    %cst_11 = arith.constant 0.000000e+00 : f32
    %18 = vector.broadcast %cst_11 : f32 to vector<8x32xf32>
    %19 = arith.cmpf oge, %17, %18 : vector<8x32xf32>
    %cst_12 = arith.constant 0.00999999977 : f32
    %20 = vector.broadcast %cst_12 : f32 to vector<8x32xf32>
    %21 = arith.mulf %20, %17 : vector<8x32xf32>
    %22 = arith.select %19, %17, %21 : vector<8x32xi1>, vector<8x32xf32>
    %c0_13 = arith.constant 0 : index
    %c0_14 = arith.constant 0 : index
    %23 = vector.load %arg5[%c0_13, %c0_14] : memref<32x16xbf16, #tpu.memory_space<vmem>>, vector<32x16xbf16>
    %c0_15 = arith.constant 0 : index
    %c256 = arith.constant 256 : index
    %24 = vector.load %arg2[%c0_15, %c256] : memref<1x4224xf32, #tpu.memory_space<vmem>>, vector<1x16xf32>
    %25 = arith.truncf %22 : vector<8x32xf32> to vector<8x32xbf16>
    %cst_16 = arith.constant dense<0.000000e+00> : vector<8x16xf32>
    %26 = tpu.matmul %25, %23, %cst_16 {dimension_numbers = #tpu.dot_dimension_numbers<[1], [0], [0], [1], [0, 0, 1, 1], [], []>} : vector<8x32xbf16>, vector<32x16xbf16>, vector<8x16xf32> -> vector<8x16xf32>
    %27 = vector.broadcast %24 : vector<1x16xf32> to vector<8x16xf32>
    %28 = arith.addf %26, %27 : vector<8x16xf32>
    %cst_17 = arith.constant 0.000000e+00 : f32
    %29 = vector.broadcast %cst_17 : f32 to vector<8x16xf32>
    %30 = arith.cmpf oge, %28, %29 : vector<8x16xf32>
    %cst_18 = arith.constant 0.00999999977 : f32
    %31 = vector.broadcast %cst_18 : f32 to vector<8x16xf32>
    %32 = arith.mulf %31, %28 : vector<8x16xf32>
    %33 = arith.select %30, %28, %32 : vector<8x16xi1>, vector<8x16xf32>
    %c0_19 = arith.constant 0 : index
    %c0_20 = arith.constant 0 : index
    %34 = vector.load %arg6[%c0_19, %c0_20] : memref<16x128xbf16, #tpu.memory_space<vmem>>, vector<16x128xbf16>
    %c0_21 = arith.constant 0 : index
    %c384 = arith.constant 384 : index
    %35 = vector.load %arg2[%c0_21, %c384] : memref<1x4224xf32, #tpu.memory_space<vmem>>, vector<1x128xf32>
    %36 = arith.truncf %33 : vector<8x16xf32> to vector<8x16xbf16>
    %cst_22 = arith.constant dense<0.000000e+00> : vector<8x128xf32>
    %37 = tpu.matmul %36, %34, %cst_22 {dimension_numbers = #tpu.dot_dimension_numbers<[1], [0], [0], [1], [0, 0, 1, 1], [], []>} : vector<8x16xbf16>, vector<16x128xbf16>, vector<8x128xf32> -> vector<8x128xf32>
    %38 = vector.broadcast %35 : vector<1x128xf32> to vector<8x128xf32>
    %39 = arith.addf %37, %38 : vector<8x128xf32>
    %cst_23 = arith.constant 0.000000e+00 : f32
    %40 = vector.broadcast %cst_23 : f32 to vector<8x128xf32>
    %41 = arith.cmpf oge, %39, %40 : vector<8x128xf32>
    %cst_24 = arith.constant 0.00999999977 : f32
    %42 = vector.broadcast %cst_24 : f32 to vector<8x128xf32>
    %43 = arith.mulf %42, %39 : vector<8x128xf32>
    %44 = arith.select %41, %39, %43 : vector<8x128xi1>, vector<8x128xf32>
    %45 = arith.addf %11, %44 : vector<8x128xf32>
    %c0_25 = arith.constant 0 : index
    %c0_26 = arith.constant 0 : index
    %46 = vector.load %arg7[%c0_25, %c0_26] : memref<128x256xbf16, #tpu.memory_space<vmem>>, vector<128x256xbf16>
    %c0_27 = arith.constant 0 : index
    %c512 = arith.constant 512 : index
    %47 = vector.load %arg2[%c0_27, %c512] : memref<1x4224xf32, #tpu.memory_space<vmem>>, vector<1x256xf32>
    %48 = arith.truncf %45 : vector<8x128xf32> to vector<8x128xbf16>
    %cst_28 = arith.constant dense<0.000000e+00> : vector<8x256xf32>
    %49 = tpu.matmul %48, %46, %cst_28 {dimension_numbers = #tpu.dot_dimension_numbers<[1], [0], [0], [1], [0, 0, 1, 1], [], []>} : vector<8x128xbf16>, vector<128x256xbf16>, vector<8x256xf32> -> vector<8x256xf32>
    %50 = vector.broadcast %47 : vector<1x256xf32> to vector<8x256xf32>
    %51 = arith.addf %49, %50 : vector<8x256xf32>
    %c0_29 = arith.constant 0 : index
    %c0_30 = arith.constant 0 : index
    %52 = vector.load %arg8[%c0_29, %c0_30] : memref<128x256xbf16, #tpu.memory_space<vmem>>, vector<128x256xbf16>
    %c0_31 = arith.constant 0 : index
    %c768 = arith.constant 768 : index
    %53 = vector.load %arg2[%c0_31, %c768] : memref<1x4224xf32, #tpu.memory_space<vmem>>, vector<1x256xf32>
    %54 = arith.truncf %45 : vector<8x128xf32> to vector<8x128xbf16>
    %cst_32 = arith.constant dense<0.000000e+00> : vector<8x256xf32>
    %55 = tpu.matmul %54, %52, %cst_32 {dimension_numbers = #tpu.dot_dimension_numbers<[1], [0], [0], [1], [0, 0, 1, 1], [], []>} : vector<8x128xbf16>, vector<128x256xbf16>, vector<8x256xf32> -> vector<8x256xf32>
    %56 = vector.broadcast %53 : vector<1x256xf32> to vector<8x256xf32>
    %57 = arith.addf %55, %56 : vector<8x256xf32>
    %cst_33 = arith.constant 5.000000e-01 : f32
    %58 = vector.broadcast %cst_33 : f32 to vector<8x256xf32>
    %59 = arith.mulf %58, %57 : vector<8x256xf32>
    %cst_34 = arith.constant 4.471500e-02 : f32
    %60 = vector.broadcast %cst_34 : f32 to vector<8x256xf32>
    %61 = arith.mulf %60, %57 : vector<8x256xf32>
    %62 = arith.mulf %61, %57 : vector<8x256xf32>
    %63 = arith.mulf %62, %57 : vector<8x256xf32>
    %64 = arith.addf %57, %63 : vector<8x256xf32>
    %cst_35 = arith.constant 0.797884583 : f32
    %65 = vector.broadcast %cst_35 : f32 to vector<8x256xf32>
    %66 = arith.mulf %65, %64 : vector<8x256xf32>
    %67 = math.tanh %66 : vector<8x256xf32>
    %cst_36 = arith.constant 1.000000e+00 : f32
    %68 = vector.broadcast %cst_36 : f32 to vector<8x256xf32>
    %69 = arith.addf %68, %67 : vector<8x256xf32>
    %70 = arith.mulf %59, %69 : vector<8x256xf32>
    %71 = arith.mulf %51, %70 : vector<8x256xf32>
    %c0_37 = arith.constant 0 : index
    %c0_38 = arith.constant 0 : index
    %72 = vector.load %arg9[%c0_37, %c0_38] : memref<256x128xbf16, #tpu.memory_space<vmem>>, vector<256x128xbf16>
    %c0_39 = arith.constant 0 : index
    %c1024 = arith.constant 1024 : index
    %73 = vector.load %arg2[%c0_39, %c1024] : memref<1x4224xf32, #tpu.memory_space<vmem>>, vector<1x128xf32>
    %74 = arith.truncf %71 : vector<8x256xf32> to vector<8x256xbf16>
    %cst_40 = arith.constant dense<0.000000e+00> : vector<8x128xf32>
    %75 = tpu.matmul %74, %72, %cst_40 {dimension_numbers = #tpu.dot_dimension_numbers<[1], [0], [0], [1], [0, 0, 1, 1], [], []>} : vector<8x256xbf16>, vector<256x128xbf16>, vector<8x128xf32> -> vector<8x128xf32>
    %76 = vector.broadcast %73 : vector<1x128xf32> to vector<8x128xf32>
    %77 = arith.addf %75, %76 : vector<8x128xf32>
    %cst_41 = arith.constant 0.000000e+00 : f32
    %78 = vector.broadcast %cst_41 : f32 to vector<8x128xf32>
    %79 = arith.cmpf oge, %77, %78 : vector<8x128xf32>
    %cst_42 = arith.constant 0.00999999977 : f32
    %80 = vector.broadcast %cst_42 : f32 to vector<8x128xf32>
    %81 = arith.mulf %80, %77 : vector<8x128xf32>
    %82 = arith.select %79, %77, %81 : vector<8x128xi1>, vector<8x128xf32>
    %c0_43 = arith.constant 0 : index
    %c0_44 = arith.constant 0 : index
    %83 = vector.load %arg10[%c0_43, %c0_44] : memref<128x32xbf16, #tpu.memory_space<vmem>>, vector<128x32xbf16>
    %c0_45 = arith.constant 0 : index
    %c1152 = arith.constant 1152 : index
    %84 = vector.load %arg2[%c0_45, %c1152] : memref<1x4224xf32, #tpu.memory_space<vmem>>, vector<1x32xf32>
    %85 = arith.truncf %82 : vector<8x128xf32> to vector<8x128xbf16>
    %cst_46 = arith.constant dense<0.000000e+00> : vector<8x32xf32>
    %86 = tpu.matmul %85, %83, %cst_46 {dimension_numbers = #tpu.dot_dimension_numbers<[1], [0], [0], [1], [0, 0, 1, 1], [], []>} : vector<8x128xbf16>, vector<128x32xbf16>, vector<8x32xf32> -> vector<8x32xf32>
    %87 = vector.broadcast %84 : vector<1x32xf32> to vector<8x32xf32>
    %88 = arith.addf %86, %87 : vector<8x32xf32>
    %cst_47 = arith.constant 0.000000e+00 : f32
    %89 = vector.broadcast %cst_47 : f32 to vector<8x32xf32>
    %90 = arith.cmpf oge, %88, %89 : vector<8x32xf32>
    %cst_48 = arith.constant 0.00999999977 : f32
    %91 = vector.broadcast %cst_48 : f32 to vector<8x32xf32>
    %92 = arith.mulf %91, %88 : vector<8x32xf32>
    %93 = arith.select %90, %88, %92 : vector<8x32xi1>, vector<8x32xf32>
    %c0_49 = arith.constant 0 : index
    %c0_50 = arith.constant 0 : index
    %94 = vector.load %arg11[%c0_49, %c0_50] : memref<32x16xbf16, #tpu.memory_space<vmem>>, vector<32x16xbf16>
    %c0_51 = arith.constant 0 : index
    %c1280 = arith.constant 1280 : index
    %95 = vector.load %arg2[%c0_51, %c1280] : memref<1x4224xf32, #tpu.memory_space<vmem>>, vector<1x16xf32>
    %96 = arith.truncf %93 : vector<8x32xf32> to vector<8x32xbf16>
    %cst_52 = arith.constant dense<0.000000e+00> : vector<8x16xf32>
    %97 = tpu.matmul %96, %94, %cst_52 {dimension_numbers = #tpu.dot_dimension_numbers<[1], [0], [0], [1], [0, 0, 1, 1], [], []>} : vector<8x32xbf16>, vector<32x16xbf16>, vector<8x16xf32> -> vector<8x16xf32>
    %98 = vector.broadcast %95 : vector<1x16xf32> to vector<8x16xf32>
    %99 = arith.addf %97, %98 : vector<8x16xf32>
    %cst_53 = arith.constant 0.000000e+00 : f32
    %100 = vector.broadcast %cst_53 : f32 to vector<8x16xf32>
    %101 = arith.cmpf oge, %99, %100 : vector<8x16xf32>
    %cst_54 = arith.constant 0.00999999977 : f32
    %102 = vector.broadcast %cst_54 : f32 to vector<8x16xf32>
    %103 = arith.mulf %102, %99 : vector<8x16xf32>
    %104 = arith.select %101, %99, %103 : vector<8x16xi1>, vector<8x16xf32>
    %c0_55 = arith.constant 0 : index
    %c0_56 = arith.constant 0 : index
    %105 = vector.load %arg12[%c0_55, %c0_56] : memref<16x128xbf16, #tpu.memory_space<vmem>>, vector<16x128xbf16>
    %c0_57 = arith.constant 0 : index
    %c1408 = arith.constant 1408 : index
    %106 = vector.load %arg2[%c0_57, %c1408] : memref<1x4224xf32, #tpu.memory_space<vmem>>, vector<1x128xf32>
    %107 = arith.truncf %104 : vector<8x16xf32> to vector<8x16xbf16>
    %cst_58 = arith.constant dense<0.000000e+00> : vector<8x128xf32>
    %108 = tpu.matmul %107, %105, %cst_58 {dimension_numbers = #tpu.dot_dimension_numbers<[1], [0], [0], [1], [0, 0, 1, 1], [], []>} : vector<8x16xbf16>, vector<16x128xbf16>, vector<8x128xf32> -> vector<8x128xf32>
    %109 = vector.broadcast %106 : vector<1x128xf32> to vector<8x128xf32>
    %110 = arith.addf %108, %109 : vector<8x128xf32>
    %cst_59 = arith.constant 0.000000e+00 : f32
    %111 = vector.broadcast %cst_59 : f32 to vector<8x128xf32>
    %112 = arith.cmpf oge, %110, %111 : vector<8x128xf32>
    %cst_60 = arith.constant 0.00999999977 : f32
    %113 = vector.broadcast %cst_60 : f32 to vector<8x128xf32>
    %114 = arith.mulf %113, %110 : vector<8x128xf32>
    %115 = arith.select %112, %110, %114 : vector<8x128xi1>, vector<8x128xf32>
    %116 = arith.addf %82, %115 : vector<8x128xf32>
    %c0_61 = arith.constant 0 : index
    %c0_62 = arith.constant 0 : index
    %117 = vector.load %arg13[%c0_61, %c0_62] : memref<128x64xbf16, #tpu.memory_space<vmem>>, vector<128x64xbf16>
    %c0_63 = arith.constant 0 : index
    %c1536 = arith.constant 1536 : index
    %118 = vector.load %arg2[%c0_63, %c1536] : memref<1x4224xf32, #tpu.memory_space<vmem>>, vector<1x64xf32>
    %119 = arith.truncf %116 : vector<8x128xf32> to vector<8x128xbf16>
    %cst_64 = arith.constant dense<0.000000e+00> : vector<8x64xf32>
    %120 = tpu.matmul %119, %117, %cst_64 {dimension_numbers = #tpu.dot_dimension_numbers<[1], [0], [0], [1], [0, 0, 1, 1], [], []>} : vector<8x128xbf16>, vector<128x64xbf16>, vector<8x64xf32> -> vector<8x64xf32>
    %121 = vector.broadcast %118 : vector<1x64xf32> to vector<8x64xf32>
    %122 = arith.addf %120, %121 : vector<8x64xf32>
    %c0_65 = arith.constant 0 : index
    %c0_66 = arith.constant 0 : index
    %123 = vector.load %arg14[%c0_65, %c0_66] : memref<128x64xbf16, #tpu.memory_space<vmem>>, vector<128x64xbf16>
    %c0_67 = arith.constant 0 : index
    %c1664 = arith.constant 1664 : index
    %124 = vector.load %arg2[%c0_67, %c1664] : memref<1x4224xf32, #tpu.memory_space<vmem>>, vector<1x64xf32>
    %125 = arith.truncf %116 : vector<8x128xf32> to vector<8x128xbf16>
    %cst_68 = arith.constant dense<0.000000e+00> : vector<8x64xf32>
    %126 = tpu.matmul %125, %123, %cst_68 {dimension_numbers = #tpu.dot_dimension_numbers<[1], [0], [0], [1], [0, 0, 1, 1], [], []>} : vector<8x128xbf16>, vector<128x64xbf16>, vector<8x64xf32> -> vector<8x64xf32>
    %127 = vector.broadcast %124 : vector<1x64xf32> to vector<8x64xf32>
    %128 = arith.addf %126, %127 : vector<8x64xf32>
    %cst_69 = arith.constant 5.000000e-01 : f32
    %129 = vector.broadcast %cst_69 : f32 to vector<8x64xf32>
    %130 = arith.mulf %129, %128 : vector<8x64xf32>
    %cst_70 = arith.constant 4.471500e-02 : f32
    %131 = vector.broadcast %cst_70 : f32 to vector<8x64xf32>
    %132 = arith.mulf %131, %128 : vector<8x64xf32>
    %133 = arith.mulf %132, %128 : vector<8x64xf32>
    %134 = arith.mulf %133, %128 : vector<8x64xf32>
    %135 = arith.addf %128, %134 : vector<8x64xf32>
    %cst_71 = arith.constant 0.797884583 : f32
    %136 = vector.broadcast %cst_71 : f32 to vector<8x64xf32>
    %137 = arith.mulf %136, %135 : vector<8x64xf32>
    %138 = math.tanh %137 : vector<8x64xf32>
    %cst_72 = arith.constant 1.000000e+00 : f32
    %139 = vector.broadcast %cst_72 : f32 to vector<8x64xf32>
    %140 = arith.addf %139, %138 : vector<8x64xf32>
    %141 = arith.mulf %130, %140 : vector<8x64xf32>
    %142 = arith.mulf %122, %141 : vector<8x64xf32>
    %c0_73 = arith.constant 0 : index
    %c0_74 = arith.constant 0 : index
    %143 = vector.load %arg15[%c0_73, %c0_74] : memref<64x32xbf16, #tpu.memory_space<vmem>>, vector<64x32xbf16>
    %c0_75 = arith.constant 0 : index
    %c1792 = arith.constant 1792 : index
    %144 = vector.load %arg2[%c0_75, %c1792] : memref<1x4224xf32, #tpu.memory_space<vmem>>, vector<1x32xf32>
    %145 = arith.truncf %142 : vector<8x64xf32> to vector<8x64xbf16>
    %cst_76 = arith.constant dense<0.000000e+00> : vector<8x32xf32>
    %146 = tpu.matmul %145, %143, %cst_76 {dimension_numbers = #tpu.dot_dimension_numbers<[1], [0], [0], [1], [0, 0, 1, 1], [], []>} : vector<8x64xbf16>, vector<64x32xbf16>, vector<8x32xf32> -> vector<8x32xf32>
    %147 = vector.broadcast %144 : vector<1x32xf32> to vector<8x32xf32>
    %148 = arith.addf %146, %147 : vector<8x32xf32>
    %cst_77 = arith.constant 0.000000e+00 : f32
    %149 = vector.broadcast %cst_77 : f32 to vector<8x32xf32>
    %150 = arith.cmpf oge, %148, %149 : vector<8x32xf32>
    %cst_78 = arith.constant 0.00999999977 : f32
    %151 = vector.broadcast %cst_78 : f32 to vector<8x32xf32>
    %152 = arith.mulf %151, %148 : vector<8x32xf32>
    %153 = arith.select %150, %148, %152 : vector<8x32xi1>, vector<8x32xf32>
    %c0_79 = arith.constant 0 : index
    %c0_80 = arith.constant 0 : index
    %154 = vector.load %arg16[%c0_79, %c0_80] : memref<32x640xbf16, #tpu.memory_space<vmem>>, vector<32x640xbf16>
    %c0_81 = arith.constant 0 : index
    %c1920 = arith.constant 1920 : index
    %155 = vector.load %arg2[%c0_81, %c1920] : memref<1x4224xf32, #tpu.memory_space<vmem>>, vector<1x640xf32>
    %156 = arith.truncf %153 : vector<8x32xf32> to vector<8x32xbf16>
    %cst_82 = arith.constant dense<0.000000e+00> : vector<8x640xf32>
    %157 = tpu.matmul %156, %154, %cst_82 {dimension_numbers = #tpu.dot_dimension_numbers<[1], [0], [0], [1], [0, 0, 1, 1], [], []>} : vector<8x32xbf16>, vector<32x640xbf16>, vector<8x640xf32> -> vector<8x640xf32>
    %158 = vector.broadcast %155 : vector<1x640xf32> to vector<8x640xf32>
    %159 = arith.addf %157, %158 : vector<8x640xf32>
    %c0_83 = arith.constant 0 : index
    %c0_84 = arith.constant 0 : index
    %160 = vector.load %arg17[%c0_83, %c0_84] : memref<32x640xbf16, #tpu.memory_space<vmem>>, vector<32x640xbf16>
    %c0_85 = arith.constant 0 : index
    %c2560 = arith.constant 2560 : index
    %161 = vector.load %arg2[%c0_85, %c2560] : memref<1x4224xf32, #tpu.memory_space<vmem>>, vector<1x640xf32>
    %162 = arith.truncf %153 : vector<8x32xf32> to vector<8x32xbf16>
    %cst_86 = arith.constant dense<0.000000e+00> : vector<8x640xf32>
    %163 = tpu.matmul %162, %160, %cst_86 {dimension_numbers = #tpu.dot_dimension_numbers<[1], [0], [0], [1], [0, 0, 1, 1], [], []>} : vector<8x32xbf16>, vector<32x640xbf16>, vector<8x640xf32> -> vector<8x640xf32>
    %164 = vector.broadcast %161 : vector<1x640xf32> to vector<8x640xf32>
    %165 = arith.addf %163, %164 : vector<8x640xf32>
    %cst_87 = arith.constant 5.000000e-01 : f32
    %166 = vector.broadcast %cst_87 : f32 to vector<8x640xf32>
    %167 = arith.mulf %166, %165 : vector<8x640xf32>
    %cst_88 = arith.constant 4.471500e-02 : f32
    %168 = vector.broadcast %cst_88 : f32 to vector<8x640xf32>
    %169 = arith.mulf %168, %165 : vector<8x640xf32>
    %170 = arith.mulf %169, %165 : vector<8x640xf32>
    %171 = arith.mulf %170, %165 : vector<8x640xf32>
    %172 = arith.addf %165, %171 : vector<8x640xf32>
    %cst_89 = arith.constant 0.797884583 : f32
    %173 = vector.broadcast %cst_89 : f32 to vector<8x640xf32>
    %174 = arith.mulf %173, %172 : vector<8x640xf32>
    %175 = math.tanh %174 : vector<8x640xf32>
    %cst_90 = arith.constant 1.000000e+00 : f32
    %176 = vector.broadcast %cst_90 : f32 to vector<8x640xf32>
    %177 = arith.addf %176, %175 : vector<8x640xf32>
    %178 = arith.mulf %167, %177 : vector<8x640xf32>
    %179 = arith.mulf %159, %178 : vector<8x640xf32>
    %c0_91 = arith.constant 0 : index
    %c0_92 = arith.constant 0 : index
    %180 = vector.load %arg18[%c0_91, %c0_92] : memref<640x160xbf16, #tpu.memory_space<vmem>>, vector<640x160xbf16>
    %c0_93 = arith.constant 0 : index
    %c3200 = arith.constant 3200 : index
    %181 = vector.load %arg2[%c0_93, %c3200] : memref<1x4224xf32, #tpu.memory_space<vmem>>, vector<1x160xf32>
    %182 = arith.truncf %179 : vector<8x640xf32> to vector<8x640xbf16>
    %cst_94 = arith.constant dense<0.000000e+00> : vector<8x160xf32>
    %183 = tpu.matmul %182, %180, %cst_94 {dimension_numbers = #tpu.dot_dimension_numbers<[1], [0], [0], [1], [0, 0, 1, 1], [], []>} : vector<8x640xbf16>, vector<640x160xbf16>, vector<8x160xf32> -> vector<8x160xf32>
    %184 = vector.broadcast %181 : vector<1x160xf32> to vector<8x160xf32>
    %185 = arith.addf %183, %184 : vector<8x160xf32>
    %cst_95 = arith.constant 0.000000e+00 : f32
    %186 = vector.broadcast %cst_95 : f32 to vector<8x160xf32>
    %187 = arith.cmpf oge, %185, %186 : vector<8x160xf32>
    %cst_96 = arith.constant 0.00999999977 : f32
    %188 = vector.broadcast %cst_96 : f32 to vector<8x160xf32>
    %189 = arith.mulf %188, %185 : vector<8x160xf32>
    %190 = arith.select %187, %185, %189 : vector<8x160xi1>, vector<8x160xf32>
    %c0_97 = arith.constant 0 : index
    %c0_98 = arith.constant 0 : index
    %191 = vector.load %arg19[%c0_97, %c0_98] : memref<160x320xbf16, #tpu.memory_space<vmem>>, vector<160x320xbf16>
    %c0_99 = arith.constant 0 : index
    %c3456 = arith.constant 3456 : index
    %192 = vector.load %arg2[%c0_99, %c3456] : memref<1x4224xf32, #tpu.memory_space<vmem>>, vector<1x320xf32>
    %193 = arith.truncf %190 : vector<8x160xf32> to vector<8x160xbf16>
    %cst_100 = arith.constant dense<0.000000e+00> : vector<8x320xf32>
    %194 = tpu.matmul %193, %191, %cst_100 {dimension_numbers = #tpu.dot_dimension_numbers<[1], [0], [0], [1], [0, 0, 1, 1], [], []>} : vector<8x160xbf16>, vector<160x320xbf16>, vector<8x320xf32> -> vector<8x320xf32>
    %195 = vector.broadcast %192 : vector<1x320xf32> to vector<8x320xf32>
    %196 = arith.addf %194, %195 : vector<8x320xf32>
    %cst_101 = arith.constant 0.000000e+00 : f32
    %197 = vector.broadcast %cst_101 : f32 to vector<8x320xf32>
    %198 = arith.cmpf oge, %196, %197 : vector<8x320xf32>
    %cst_102 = arith.constant 0.00999999977 : f32
    %199 = vector.broadcast %cst_102 : f32 to vector<8x320xf32>
    %200 = arith.mulf %199, %196 : vector<8x320xf32>
    %201 = arith.select %198, %196, %200 : vector<8x320xi1>, vector<8x320xf32>
    %c0_103 = arith.constant 0 : index
    %c0_104 = arith.constant 0 : index
    %202 = vector.load %arg20[%c0_103, %c0_104] : memref<320x160xbf16, #tpu.memory_space<vmem>>, vector<320x160xbf16>
    %c0_105 = arith.constant 0 : index
    %c3840 = arith.constant 3840 : index
    %203 = vector.load %arg2[%c0_105, %c3840] : memref<1x4224xf32, #tpu.memory_space<vmem>>, vector<1x160xf32>
    %204 = arith.truncf %201 : vector<8x320xf32> to vector<8x320xbf16>
    %cst_106 = arith.constant dense<0.000000e+00> : vector<8x160xf32>
    %205 = tpu.matmul %204, %202, %cst_106 {dimension_numbers = #tpu.dot_dimension_numbers<[1], [0], [0], [1], [0, 0, 1, 1], [], []>} : vector<8x320xbf16>, vector<320x160xbf16>, vector<8x160xf32> -> vector<8x160xf32>
    %206 = vector.broadcast %203 : vector<1x160xf32> to vector<8x160xf32>
    %207 = arith.addf %205, %206 : vector<8x160xf32>
    %cst_107 = arith.constant 0.000000e+00 : f32
    %208 = vector.broadcast %cst_107 : f32 to vector<8x160xf32>
    %209 = arith.cmpf oge, %207, %208 : vector<8x160xf32>
    %cst_108 = arith.constant 0.00999999977 : f32
    %210 = vector.broadcast %cst_108 : f32 to vector<8x160xf32>
    %211 = arith.mulf %210, %207 : vector<8x160xf32>
    %212 = arith.select %209, %207, %211 : vector<8x160xi1>, vector<8x160xf32>
    %c0_109 = arith.constant 0 : index
    %c0_110 = arith.constant 0 : index
    %213 = vector.load %arg21[%c0_109, %c0_110] : memref<160x10xbf16, #tpu.memory_space<vmem>>, vector<160x10xbf16>
    %c0_111 = arith.constant 0 : index
    %c4096 = arith.constant 4096 : index
    %214 = vector.load %arg2[%c0_111, %c4096] : memref<1x4224xf32, #tpu.memory_space<vmem>>, vector<1x10xf32>
    %215 = arith.truncf %212 : vector<8x160xf32> to vector<8x160xbf16>
    %cst_112 = arith.constant dense<0.000000e+00> : vector<8x10xf32>
    %216 = tpu.matmul %215, %213, %cst_112 {dimension_numbers = #tpu.dot_dimension_numbers<[1], [0], [0], [1], [0, 0, 1, 1], [], []>} : vector<8x160xbf16>, vector<160x10xbf16>, vector<8x10xf32> -> vector<8x10xf32>
    %217 = vector.broadcast %214 : vector<1x10xf32> to vector<8x10xf32>
    %218 = arith.addf %216, %217 : vector<8x10xf32>
    %cst_113 = arith.constant 0.000000e+00 : f32
    %219 = vector.broadcast %cst_113 : f32 to vector<8x10xf32>
    %220 = arith.cmpf oge, %218, %219 : vector<8x10xf32>
    %cst_114 = arith.constant 0.00999999977 : f32
    %221 = vector.broadcast %cst_114 : f32 to vector<8x10xf32>
    %222 = arith.mulf %221, %218 : vector<8x10xf32>
    %223 = arith.select %220, %218, %222 : vector<8x10xi1>, vector<8x10xf32>
    %c0_115 = arith.constant 0 : index
    %c0_116 = arith.constant 0 : index
    %224 = vector.load %arg22[%c0_115, %c0_116] : memref<8x10xf32, #tpu.memory_space<vmem>>, vector<8x10xf32>
    tpu.vector_store %arg22[%c0_115, %c0_116], %223 {strides = array<i32>} : memref<8x10xf32, #tpu.memory_space<vmem>>, vector<8x10xf32>,
    return
  }
  func.func @transform_0(%arg0: i32) -> (i32, i32) {
    %c0_i32 = arith.constant 0 : i32
    %c0_i32_0 = arith.constant 0 : i32
    return %arg0, %c0_i32 : i32, i32
  }
  func.func @transform_1(%arg0: i32) -> (i32, i32) {
    %c0_i32 = arith.constant 0 : i32
    %c0_i32_0 = arith.constant 0 : i32
    %c0_i32_1 = arith.constant 0 : i32
    return %c0_i32, %c0_i32_0 : i32, i32
  }
  func.func @transform_2(%arg0: i32) -> (i32, i32) {
    %c0_i32 = arith.constant 0 : i32
    %c0_i32_0 = arith.constant 0 : i32
    %c0_i32_1 = arith.constant 0 : i32
    return %c0_i32, %c0_i32_0 : i32, i32
  }
  func.func @transform_3(%arg0: i32) -> (i32, i32) {
    %c0_i32 = arith.constant 0 : i32
    %c0_i32_0 = arith.constant 0 : i32
    %c0_i32_1 = arith.constant 0 : i32
    return %c0_i32, %c0_i32_0 : i32, i32
  }
  func.func @transform_4(%arg0: i32) -> (i32, i32) {
    %c0_i32 = arith.constant 0 : i32
    %c0_i32_0 = arith.constant 0 : i32
    %c0_i32_1 = arith.constant 0 : i32
    return %c0_i32, %c0_i32_0 : i32, i32
  }
  func.func @transform_5(%arg0: i32) -> (i32, i32) {
    %c0_i32 = arith.constant 0 : i32
    %c0_i32_0 = arith.constant 0 : i32
    %c0_i32_1 = arith.constant 0 : i32
    return %c0_i32, %c0_i32_0 : i32, i32
  }
  func.func @transform_6(%arg0: i32) -> (i32, i32) {
    %c0_i32 = arith.constant 0 : i32
    %c0_i32_0 = arith.constant 0 : i32
    %c0_i32_1 = arith.constant 0 : i32
    return %c0_i32, %c0_i32_0 : i32, i32
  }
  func.func @transform_7(%arg0: i32) -> (i32, i32) {
    %c0_i32 = arith.constant 0 : i32
    %c0_i32_0 = arith.constant 0 : i32
    %c0_i32_1 = arith.constant 0 : i32
    return %c0_i32, %c0_i32_0 : i32, i32
  }
  func.func @transform_8(%arg0: i32) -> (i32, i32) {
    %c0_i32 = arith.constant 0 : i32
    %c0_i32_0 = arith.constant 0 : i32
    %c0_i32_1 = arith.constant 0 : i32
    return %c0_i32, %c0_i32_0 : i32, i32
  }
  func.func @transform_9(%arg0: i32) -> (i32, i32) {
    %c0_i32 = arith.constant 0 : i32
    %c0_i32_0 = arith.constant 0 : i32
    %c0_i32_1 = arith.constant 0 : i32
    return %c0_i32, %c0_i32_0 : i32, i32
  }
  func.func @transform_10(%arg0: i32) -> (i32, i32) {
    %c0_i32 = arith.constant 0 : i32
    %c0_i32_0 = arith.constant 0 : i32
    %c0_i32_1 = arith.constant 0 : i32
    return %c0_i32, %c0_i32_0 : i32, i32
  }
  func.func @transform_11(%arg0: i32) -> (i32, i32) {
    %c0_i32 = arith.constant 0 : i32
    %c0_i32_0 = arith.constant 0 : i32
    %c0_i32_1 = arith.constant 0 : i32
    return %c0_i32, %c0_i32_0 : i32, i32
  }
  func.func @transform_12(%arg0: i32) -> (i32, i32) {
    %c0_i32 = arith.constant 0 : i32
    %c0_i32_0 = arith.constant 0 : i32
    %c0_i32_1 = arith.constant 0 : i32
    return %c0_i32, %c0_i32_0 : i32, i32
  }
  func.func @transform_13(%arg0: i32) -> (i32, i32) {
    %c0_i32 = arith.constant 0 : i32
    %c0_i32_0 = arith.constant 0 : i32
    %c0_i32_1 = arith.constant 0 : i32
    return %c0_i32, %c0_i32_0 : i32, i32
  }
  func.func @transform_14(%arg0: i32) -> (i32, i32) {
    %c0_i32 = arith.constant 0 : i32
    %c0_i32_0 = arith.constant 0 : i32
    %c0_i32_1 = arith.constant 0 : i32
    return %c0_i32, %c0_i32_0 : i32, i32
  }
  func.func @transform_15(%arg0: i32) -> (i32, i32) {
    %c0_i32 = arith.constant 0 : i32
    %c0_i32_0 = arith.constant 0 : i32
    %c0_i32_1 = arith.constant 0 : i32
    return %c0_i32, %c0_i32_0 : i32, i32
  }
  func.func @transform_16(%arg0: i32) -> (i32, i32) {
    %c0_i32 = arith.constant 0 : i32
    %c0_i32_0 = arith.constant 0 : i32
    %c0_i32_1 = arith.constant 0 : i32
    return %c0_i32, %c0_i32_0 : i32, i32
  }
  func.func @transform_17(%arg0: i32) -> (i32, i32) {
    %c0_i32 = arith.constant 0 : i32
    %c0_i32_0 = arith.constant 0 : i32
    %c0_i32_1 = arith.constant 0 : i32
    return %c0_i32, %c0_i32_0 : i32, i32
  }
  func.func @transform_18(%arg0: i32) -> (i32, i32) {
    %c0_i32 = arith.constant 0 : i32
    %c0_i32_0 = arith.constant 0 : i32
    %c0_i32_1 = arith.constant 0 : i32
    return %c0_i32, %c0_i32_0 : i32, i32
  }
  func.func @transform_19(%arg0: i32) -> (i32, i32) {
    %c0_i32 = arith.constant 0 : i32
    %c0_i32_0 = arith.constant 0 : i32
    %c0_i32_1 = arith.constant 0 : i32
    return %c0_i32, %c0_i32_0 : i32, i32
  }
  func.func @transform_20(%arg0: i32) -> (i32, i32) {
    %c0_i32 = arith.constant 0 : i32
    %c0_i32_0 = arith.constant 0 : i32
    %c0_i32_1 = arith.constant 0 : i32
    return %c0_i32, %c0_i32_0 : i32, i32
  }
  func.func @transform_21(%arg0: i32) -> (i32, i32) {
    %c0_i32 = arith.constant 0 : i32
    %c0_i32_0 = arith.constant 0 : i32
    return %arg0, %c0_i32 : i32, i32
  }
}

</mosaic_0001>

<llo_original>
// kernel: _fused_call.1
$region0: #{_fused_call.1}
  #allocation0 [shape = 'u32[]', space=smem, size = 0x4, offset = 0x4, fixed_abs, tag = 'smem constant byte address 0x4 - core index']
  #allocation1 [shape = 'u32[72,128]{1,0:T(1,128)}', space=vmem, size = 0x9000, scoped, tag = 'internal scratch']
  %s0 = inlined_call_operand.vmem [shape: f32[8,10], index: 0, kind: input, shape index: {}]
  %s1 = inlined_call_operand.vmem [shape: f32[1,4224], index: 1, kind: input, shape index: {}]
  %s2 = inlined_call_operand.vmem [shape: bf16[10,128], index: 2, kind: input, shape index: {}]
  %s3 = inlined_call_operand.vmem [shape: bf16[128,32], index: 3, kind: input, shape index: {}]
  %s4 = inlined_call_operand.vmem [shape: bf16[32,16], index: 4, kind: input, shape index: {}]
  %s5 = inlined_call_operand.vmem [shape: bf16[16,128], index: 5, kind: input, shape index: {}]
  %s6 = inlined_call_operand.vmem [shape: bf16[128,256], index: 6, kind: input, shape index: {}]
  %s7 = inlined_call_operand.vmem [shape: bf16[128,256], index: 7, kind: input, shape index: {}]
  %s8 = inlined_call_operand.vmem [shape: bf16[256,128], index: 8, kind: input, shape index: {}]
  %s9 = inlined_call_operand.vmem [shape: bf16[128,32], index: 9, kind: input, shape index: {}]
  %s10 = inlined_call_operand.vmem [shape: bf16[32,16], index: 10, kind: input, shape index: {}]
  %s11 = inlined_call_operand.vmem [shape: bf16[16,128], index: 11, kind: input, shape index: {}]
  %s12 = inlined_call_operand.vmem [shape: bf16[128,64], index: 12, kind: input, shape index: {}]
  %s13 = inlined_call_operand.vmem [shape: bf16[128,64], index: 13, kind: input, shape index: {}]
  %s14 = inlined_call_operand.vmem [shape: bf16[64,32], index: 14, kind: input, shape index: {}]
  %s15 = inlined_call_operand.vmem [shape: bf16[32,640], index: 15, kind: input, shape index: {}]
  %s16 = inlined_call_operand.vmem [shape: bf16[32,640], index: 16, kind: input, shape index: {}]
  %s17 = inlined_call_operand.vmem [shape: bf16[640,160], index: 17, kind: input, shape index: {}]
  %s18 = inlined_call_operand.vmem [shape: bf16[160,320], index: 18, kind: input, shape index: {}]
  %s19 = inlined_call_operand.vmem [shape: bf16[320,160], index: 19, kind: input, shape index: {}]
  %s20 = inlined_call_operand.vmem [shape: bf16[160,10], index: 20, kind: input, shape index: {}]
  %s21 = inlined_call_operand.hbm [shape: f32[8,10], index: 21, kind: output, shape index: {}]
  %s22 = sld [smem:[#allocation0]]
  $region94: #{_fused_call.1} parent=0
    _
  %s24 = ssub.s32 1, %s22
  %s25 = scalar_select 0, %s24, %s22
  $region1: #{_fused_call.1} parent=0
    #allocation2 [shape = 'u8[4096]{0}', space=vmem, size = 0x1000, scoped, tag = 'output window, operand 0, single buffered']
    #allocation3 [shape = 's32[1]{0}', space=sflag, size = 0x4, scoped, tag = 'scoped memory for _fused_call.1']
    %26 = vsyncpa [#allocation3], 0
    // Predicated region
    $region2: #{_fused_call.1} parent=1 // pred_check
      _
    $region3: #{_fused_call.1} parent=1 // pred_check_branch
      %28 = sbr.rel (0) target = $region5
    $region4: #{_fused_call.1} parent=1 // pred_region
      _
    $region5: #{_fused_call.1} parent=1 // pred_fallthru
      _
    // Predicated region
    $region6: #{_fused_call.1} parent=1 // pred_check
      _
    $region7: #{_fused_call.1} parent=1 // pred_check_branch
      %30 = sbr.rel (0) target = $region9
    $region8: #{_fused_call.1} parent=1 // pred_region
      _
    $region9: #{_fused_call.1} parent=1 // pred_fallthru
      _
    // Predicated region
    $region10: #{_fused_call.1} parent=1 // pred_check
      _
    $region11: #{_fused_call.1} parent=1 // pred_check_branch
      %32 = sbr.rel (0) target = $region13
    $region12: #{_fused_call.1} parent=1 // pred_region
      _
    $region13: #{_fused_call.1} parent=1 // pred_fallthru
      _
    // Predicated region
    $region14: #{_fused_call.1} parent=1 // pred_check
      _
    $region15: #{_fused_call.1} parent=1 // pred_check_branch
      %34 = sbr.rel (0) target = $region17
    $region16: #{_fused_call.1} parent=1 // pred_region
      _
    $region17: #{_fused_call.1} parent=1 // pred_fallthru
      _
    // Predicated region
    $region18: #{_fused_call.1} parent=1 // pred_check
      _
    $region19: #{_fused_call.1} parent=1 // pred_check_branch
      %36 = sbr.rel (0) target = $region21
    $region20: #{_fused_call.1} parent=1 // pred_region
      _
    $region21: #{_fused_call.1} parent=1 // pred_fallthru
      _
    // Predicated region
    $region22: #{_fused_call.1} parent=1 // pred_check
      _
    $region23: #{_fused_call.1} parent=1 // pred_check_branch
      %38 = sbr.rel (0) target = $region25
    $region24: #{_fused_call.1} parent=1 // pred_region
      _
    $region25: #{_fused_call.1} parent=1 // pred_fallthru
      _
    // Predicated region
    $region26: #{_fused_call.1} parent=1 // pred_check
      _
    $region27: #{_fused_call.1} parent=1 // pred_check_branch
      %40 = sbr.rel (0) target = $region29
    $region28: #{_fused_call.1} parent=1 // pred_region
      _
    $region29: #{_fused_call.1} parent=1 // pred_fallthru
      _
    // Predicated region
    $region30: #{_fused_call.1} parent=1 // pred_check
      _
    $region31: #{_fused_call.1} parent=1 // pred_check_branch
      %42 = sbr.rel (0) target = $region33
    $region32: #{_fused_call.1} parent=1 // pred_region
      _
    $region33: #{_fused_call.1} parent=1 // pred_fallthru
      _
    // Predicated region
    $region34: #{_fused_call.1} parent=1 // pred_check
      _
    $region35: #{_fused_call.1} parent=1 // pred_check_branch
      %44 = sbr.rel (0) target = $region37
    $region36: #{_fused_call.1} parent=1 // pred_region
      _
    $region37: #{_fused_call.1} parent=1 // pred_fallthru
      _
    // Predicated region
    $region38: #{_fused_call.1} parent=1 // pred_check
      _
    $region39: #{_fused_call.1} parent=1 // pred_check_branch
      %46 = sbr.rel (0) target = $region41
    $region40: #{_fused_call.1} parent=1 // pred_region
      _
    $region41: #{_fused_call.1} parent=1 // pred_fallthru
      _
    // Predicated region
    $region42: #{_fused_call.1} parent=1 // pred_check
      _
    $region43: #{_fused_call.1} parent=1 // pred_check_branch
      %48 = sbr.rel (0) target = $region45
    $region44: #{_fused_call.1} parent=1 // pred_region
      _
    $region45: #{_fused_call.1} parent=1 // pred_fallthru
      _
    // Predicated region
    $region46: #{_fused_call.1} parent=1 // pred_check
      _
    $region47: #{_fused_call.1} parent=1 // pred_check_branch
      %50 = sbr.rel (0) target = $region49
    $region48: #{_fused_call.1} parent=1 // pred_region
      _
    $region49: #{_fused_call.1} parent=1 // pred_fallthru
      _
    // Predicated region
    $region50: #{_fused_call.1} parent=1 // pred_check
      _
    $region51: #{_fused_call.1} parent=1 // pred_check_branch
      %52 = sbr.rel (0) target = $region53
    $region52: #{_fused_call.1} parent=1 // pred_region
      _
    $region53: #{_fused_call.1} parent=1 // pred_fallthru
      _
    // Predicated region
    $region54: #{_fused_call.1} parent=1 // pred_check
      _
    $region55: #{_fused_call.1} parent=1 // pred_check_branch
      %54 = sbr.rel (0) target = $region57
    $region56: #{_fused_call.1} parent=1 // pred_region
      _
    $region57: #{_fused_call.1} parent=1 // pred_fallthru
      _
    // Predicated region
    $region58: #{_fused_call.1} parent=1 // pred_check
      _
    $region59: #{_fused_call.1} parent=1 // pred_check_branch
      %56 = sbr.rel (0) target = $region61
    $region60: #{_fused_call.1} parent=1 // pred_region
      _
    $region61: #{_fused_call.1} parent=1 // pred_fallthru
      _
    // Predicated region
    $region62: #{_fused_call.1} parent=1 // pred_check
      _
    $region63: #{_fused_call.1} parent=1 // pred_check_branch
      %58 = sbr.rel (0) target = $region65
    $region64: #{_fused_call.1} parent=1 // pred_region
      _
    $region65: #{_fused_call.1} parent=1 // pred_fallthru
      _
    // Predicated region
    $region66: #{_fused_call.1} parent=1 // pred_check
      _
    $region67: #{_fused_call.1} parent=1 // pred_check_branch
      %60 = sbr.rel (0) target = $region69
    $region68: #{_fused_call.1} parent=1 // pred_region
      _
    $region69: #{_fused_call.1} parent=1 // pred_fallthru
      _
    // Predicated region
    $region70: #{_fused_call.1} parent=1 // pred_check
      _
    $region71: #{_fused_call.1} parent=1 // pred_check_branch
      %62 = sbr.rel (0) target = $region73
    $region72: #{_fused_call.1} parent=1 // pred_region
      _
    $region73: #{_fused_call.1} parent=1 // pred_fallthru
      _
    // Predicated region
    $region74: #{_fused_call.1} parent=1 // pred_check
      _
    $region75: #{_fused_call.1} parent=1 // pred_check_branch
      %64 = sbr.rel (0) target = $region77
    $region76: #{_fused_call.1} parent=1 // pred_region
      _
    $region77: #{_fused_call.1} parent=1 // pred_fallthru
      _
    // Predicated region
    $region78: #{_fused_call.1} parent=1 // pred_check
      _
    $region79: #{_fused_call.1} parent=1 // pred_check_branch
      %66 = sbr.rel (0) target = $region81
    $region80: #{_fused_call.1} parent=1 // pred_region
      _
    $region81: #{_fused_call.1} parent=1 // pred_fallthru
      _
    // Predicated region
    $region82: #{_fused_call.1} parent=1 // pred_check
      _
    $region83: #{_fused_call.1} parent=1 // pred_check_branch
      %68 = sbr.rel (0) target = $region85
    $region84: #{_fused_call.1} parent=1 // pred_region
      _
    $region85: #{_fused_call.1} parent=1 // pred_fallthru
      _
    %v70 = vld [vmem:[%s0] sm:$0xff]
    %v71 = vld [vmem:[%s2] sm:$0xf]
    %v72 = vld [vmem:[%s2 + $0x4] sm:$0x1]
    %v73 = vld [vmem:[%s1] sm:$0x1]
    %v74 = vpack.c.bf16 %v70, %v70
    %v76 = vperm.slane %v73, 0
    %v80 = vunpack.c.l.b16 %v71
    %v81 = vunpack.c.l.b16 %v72
    %v82 = vpack.c.b16 %v81, %v80
    %vm83 = vcmask 80896
    %v85 = vsel %vm83, %v74, 0
    %vm87 = vcmask 1044480
    %v89 = vsel %vm87, %v82, 0
    %91 = vmatpush.bf16.msra.mxu0 0
    %92 = vmatpush.bf16.msra.mxu0 0
    %93 = vmatpush.bf16.msra.mxu0 0
    %94 = vmatpush.bf16.msra.mxu0 0
    %95 = vmatpush.bf16.msra.mxu0 0
    %96 = vmatpush.bf16.msra.mxu0 0
    %97 = vmatpush.bf16.msra.mxu0 0
    %98 = vmatpush.bf16.msra.mxu0 %v89
    %99 = vmatmul.bf16.gmra.mxu0 %v85
    %v100 = vpop.f32.mrf.mxu0
    %v101 = vadd.f32 %v76, %v100
    %v102 = vpop.f32.mrf.mxu0
    %103 = vdwg.mxu0
    %vm104 = vcmp.ge.f32.partialorder %v101, 0.0
    %v105 = vmul.f32 %v101, 0.01
    %v106 = vsel %vm104, %v101, %v105
    %v107 = vld [vmem:[%s3] sm:$0xf]
    %v108 = vld [vmem:[%s3 + $0x4] sm:$0xf]
    %v109 = vld [vmem:[%s3 + $0x8] sm:$0xf]
    %v110 = vld [vmem:[%s3 + $0xc] sm:$0xf]
    %v111 = vld [vmem:[%s3 + $0x10] sm:$0xf]
    %v112 = vld [vmem:[%s3 + $0x14] sm:$0xf]
    %v113 = vld [vmem:[%s3 + $0x18] sm:$0xf]
    %v114 = vld [vmem:[%s3 + $0x1c] sm:$0xf]
    %v115 = vld [vmem:[%s3 + $0x20] sm:$0xf]
    %v116 = vld [vmem:[%s3 + $0x24] sm:$0xf]
    %v117 = vld [vmem:[%s3 + $0x28] sm:$0xf]
    %v118 = vld [vmem:[%s3 + $0x2c] sm:$0xf]
    %v119 = vld [vmem:[%s3 + $0x30] sm:$0xf]
    %v120 = vld [vmem:[%s3 + $0x34] sm:$0xf]
    %v121 = vld [vmem:[%s3 + $0x38] sm:$0xf]
    %v122 = vld [vmem:[%s3 + $0x3c] sm:$0xf]
    %v123 = vld [vmem:[%s1 + $0x1] sm:$0x1]
    %v124 = vpack.c.bf16 %v106, %v106
    %v126 = vperm.slane %v123, 0
    %v144 = vunpack.c.l.b16 %v107
    %v145 = vunpack.c.l.b16 %v108
    %v146 = vunpack.c.l.b16 %v109
    %v147 = vunpack.c.l.b16 %v110
    %v148 = vunpack.c.l.b16 %v111
    %v149 = vunpack.c.l.b16 %v112
    %v150 = vunpack.c.l.b16 %v113
    %v151 = vunpack.c.l.b16 %v114
    %v152 = vunpack.c.l.b16 %v115
    %v153 = vunpack.c.l.b16 %v116
    %v154 = vunpack.c.l.b16 %v117
    %v155 = vunpack.c.l.b16 %v118
    %v156 = vunpack.c.l.b16 %v119
    %v157 = vunpack.c.l.b16 %v120
    %v158 = vunpack.c.l.b16 %v121
    %v159 = vunpack.c.l.b16 %v122
    %v160 = vpack.c.b16 %v145, %v144
    %v161 = vpack.c.b16 %v147, %v146
    %v162 = vpack.c.b16 %v149, %v148
    %v163 = vpack.c.b16 %v151, %v150
    %v164 = vpack.c.b16 %v153, %v152
    %v165 = vpack.c.b16 %v155, %v154
    %v166 = vpack.c.b16 %v157, %v156
    %v167 = vpack.c.b16 %v159, %v158
    %176 = vmatpush.bf16.msra.mxu0 %v167
    %177 = vmatpush.bf16.msra.mxu0 %v166
    %178 = vmatpush.bf16.msra.mxu0 %v165
    %179 = vmatpush.bf16.msra.mxu0 %v164
    %180 = vmatpush.bf16.msra.mxu0 %v163
    %181 = vmatpush.bf16.msra.mxu0 %v162
    %182 = vmatpush.bf16.msra.mxu0 %v161
    %183 = vmatpush.bf16.msra.mxu0 %v160
    %184 = vmatmul.bf16.gmra.mxu0 %v124
    %v185 = vpop.f32.mrf.mxu0
    %v186 = vadd.f32 %v126, %v185
    %v187 = vpop.f32.mrf.mxu0
    %188 = vdwg.mxu0
    %vm189 = vcmp.ge.f32.partialorder %v186, 0.0
    %v190 = vmul.f32 %v186, 0.01
    %v191 = vsel %vm189, %v186, %v190
    %v192 = vld [vmem:[%s4] sm:$0xf]
    %v193 = vld [vmem:[%s4 + $0x4] sm:$0xf]
    %v194 = vld [vmem:[%s4 + $0x8] sm:$0xf]
    %v195 = vld [vmem:[%s4 + $0xc] sm:$0xf]
    %v196 = vld [vmem:[%s1 + $0x2] sm:$0x1]
    %v197 = vpack.c.bf16 %v191, %v191
    %v199 = vperm.slane %v196, 0
    %v205 = vunpack.c.l.b16 %v192
    %v206 = vunpack.c.l.b16 %v193
    %v207 = vunpack.c.l.b16 %v194
    %v208 = vunpack.c.l.b16 %v195
    %v209 = vpack.c.b16 %v206, %v205
    %v210 = vpack.c.b16 %v208, %v207
    %vm213 = vcmask 261120
    %v215 = vsel %vm213, %v197, 0
    %217 = vmatpush.bf16.msra.mxu0 0
    %218 = vmatpush.bf16.msra.mxu0 0
    %219 = vmatpush.bf16.msra.mxu0 0
    %220 = vmatpush.bf16.msra.mxu0 0
    %221 = vmatpush.bf16.msra.mxu0 0
    %222 = vmatpush.bf16.msra.mxu0 0
    %223 = vmatpush.bf16.msra.mxu0 %v210
    %224 = vmatpush.bf16.msra.mxu0 %v209
    %225 = vmatmul.bf16.gmra.mxu0 %v215
    %v226 = vpop.f32.mrf.mxu0
    %v227 = vadd.f32 %v199, %v226
    %v228 = vpop.f32.mrf.mxu0
    %229 = vdwg.mxu0
    %vm230 = vcmp.ge.f32.partialorder %v227, 0.0
    %v231 = vmul.f32 %v227, 0.01
    %v232 = vsel %vm230, %v227, %v231
    %v233 = vld [vmem:[%s5] sm:$0xf]
    %v234 = vld [vmem:[%s5 + $0x4] sm:$0xf]
    %v235 = vld [vmem:[%s1 + $0x3] sm:$0x1]
    %v236 = vpack.c.bf16 %v232, %v232
    %v238 = vperm.slane %v235, 0
    %v242 = vunpack.c.l.b16 %v233
    %v243 = vunpack.c.l.b16 %v234
    %v244 = vpack.c.b16 %v243, %v242
    %vm246 = vcmask 130048
    %v248 = vsel %vm246, %v236, 0
    %250 = vmatpush.bf16.msra.mxu0 0
    %251 = vmatpush.bf16.msra.mxu0 0
    %252 = vmatpush.bf16.msra.mxu0 0
    %253 = vmatpush.bf16.msra.mxu0 0
    %254 = vmatpush.bf16.msra.mxu0 0
    %255 = vmatpush.bf16.msra.mxu0 0
    %256 = vmatpush.bf16.msra.mxu0 0
    %257 = vmatpush.bf16.msra.mxu0 %v244
    %258 = vmatmul.bf16.gmra.mxu0 %v248
    %v259 = vpop.f32.mrf.mxu0
    %v260 = vadd.f32 %v238, %v259
    %v261 = vpop.f32.mrf.mxu0
    %262 = vdwg.mxu0
    %vm263 = vcmp.ge.f32.partialorder %v260, 0.0
    %v264 = vmul.f32 %v260, 0.01
    %v265 = vsel %vm263, %v260, %v264
    %v266 = vadd.f32 %v106, %v265
    %v267 = vld [vmem:[%s6] sm:$0xff]
    %v268 = vld [vmem:[%s6 + $0x8] sm:$0xff]
    %v269 = vld [vmem:[%s6 + $0x10] sm:$0xff]
    %v270 = vld [vmem:[%s6 + $0x18] sm:$0xff]
    %v271 = vld [vmem:[%s6 + $0x20] sm:$0xff]
    %v272 = vld [vmem:[%s6 + $0x28] sm:$0xff]
    %v273 = vld [vmem:[%s6 + $0x30] sm:$0xff]
    %v274 = vld [vmem:[%s6 + $0x38] sm:$0xff]
    %v275 = vld [vmem:[%s6 + $0x40] sm:$0xff]
    %v276 = vld [vmem:[%s6 + $0x48] sm:$0xff]
    %v277 = vld [vmem:[%s6 + $0x50] sm:$0xff]
    %v278 = vld [vmem:[%s6 + $0x58] sm:$0xff]
    %v279 = vld [vmem:[%s6 + $0x60] sm:$0xff]
    %v280 = vld [vmem:[%s6 + $0x68] sm:$0xff]
    %v281 = vld [vmem:[%s6 + $0x70] sm:$0xff]
    %v282 = vld [vmem:[%s6 + $0x78] sm:$0xff]
    %v283 = vld [vmem:[%s1 + $0x4] sm:$0x3]
    %v284 = vpack.c.bf16 %v266, %v266
    %v286 = vperm.slane %v283, 0
    %v287 = vperm.slane %v283, 1
    %v306 = vunpack.c.l.b16 %v267
    %v307 = vunpack.c.h.b16 %v267
    %v308 = vunpack.c.l.b16 %v268
    %v309 = vunpack.c.h.b16 %v268
    %v310 = vunpack.c.l.b16 %v269
    %v311 = vunpack.c.h.b16 %v269
    %v312 = vunpack.c.l.b16 %v270
    %v313 = vunpack.c.h.b16 %v270
    %v314 = vunpack.c.l.b16 %v271
    %v315 = vunpack.c.h.b16 %v271
    %v316 = vunpack.c.l.b16 %v272
    %v317 = vunpack.c.h.b16 %v272
    %v318 = vunpack.c.l.b16 %v273
    %v319 = vunpack.c.h.b16 %v273
    %v320 = vunpack.c.l.b16 %v274
    %v321 = vunpack.c.h.b16 %v274
    %v322 = vunpack.c.l.b16 %v275
    %v323 = vunpack.c.h.b16 %v275
    %v324 = vunpack.c.l.b16 %v276
    %v325 = vunpack.c.h.b16 %v276
    %v326 = vunpack.c.l.b16 %v277
    %v327 = vunpack.c.h.b16 %v277
    %v328 = vunpack.c.l.b16 %v278
    %v329 = vunpack.c.h.b16 %v278
    %v330 = vunpack.c.l.b16 %v279
    %v331 = vunpack.c.h.b16 %v279
    %v332 = vunpack.c.l.b16 %v280
    %v333 = vunpack.c.h.b16 %v280
    %v334 = vunpack.c.l.b16 %v281
    %v335 = vunpack.c.h.b16 %v281
    %v336 = vunpack.c.l.b16 %v282
    %v337 = vunpack.c.h.b16 %v282
    %v338 = vpack.c.b16 %v308, %v306
    %v339 = vpack.c.b16 %v309, %v307
    %v340 = vpack.c.b16 %v312, %v310
    %v341 = vpack.c.b16 %v313, %v311
    %v342 = vpack.c.b16 %v316, %v314
    %v343 = vpack.c.b16 %v317, %v315
    %v344 = vpack.c.b16 %v320, %v318
    %v345 = vpack.c.b16 %v321, %v319
    %v346 = vpack.c.b16 %v324, %v322
    %v347 = vpack.c.b16 %v325, %v323
    %v348 = vpack.c.b16 %v328, %v326
    %v349 = vpack.c.b16 %v329, %v327
    %v350 = vpack.c.b16 %v332, %v330
    %v351 = vpack.c.b16 %v333, %v331
    %v352 = vpack.c.b16 %v336, %v334
    %v353 = vpack.c.b16 %v337, %v335
    %370 = vmatpush.bf16.msra.mxu0 %v352
    %371 = vmatpush.bf16.msra.mxu0 %v350
    %372 = vmatpush.bf16.msra.mxu0 %v348
    %373 = vmatpush.bf16.msra.mxu0 %v346
    %374 = vmatpush.bf16.msra.mxu0 %v344
    %375 = vmatpush.bf16.msra.mxu0 %v342
    %376 = vmatpush.bf16.msra.mxu0 %v340
    %377 = vmatpush.bf16.msra.mxu0 %v338
    %378 = vmatmul.bf16.gmra.mxu0 %v284
    %v379 = vpop.f32.mrf.mxu0
    %v380 = vadd.f32 %v286, %v379
    %v381 = vpop.f32.mrf.mxu0
    %382 = vdwg.mxu0
    %383 = vmatpush.bf16.msra.mxu0 %v353
    %384 = vmatpush.bf16.msra.mxu0 %v351
    %385 = vmatpush.bf16.msra.mxu0 %v349
    %386 = vmatpush.bf16.msra.mxu0 %v347
    %387 = vmatpush.bf16.msra.mxu0 %v345
    %388 = vmatpush.bf16.msra.mxu0 %v343
    %389 = vmatpush.bf16.msra.mxu0 %v341
    %390 = vmatpush.bf16.msra.mxu0 %v339
    %391 = vmatmul.bf16.gmra.mxu0 %v284
    %v392 = vpop.f32.mrf.mxu0
    %v393 = vadd.f32 %v287, %v392
    %v394 = vpop.f32.mrf.mxu0
    %395 = vdwg.mxu0
    %v396 = vld [vmem:[%s7] sm:$0xff]
    %v397 = vld [vmem:[%s7 + $0x8] sm:$0xff]
    %v398 = vld [vmem:[%s7 + $0x10] sm:$0xff]
    %v399 = vld [vmem:[%s7 + $0x18] sm:$0xff]
    %v400 = vld [vmem:[%s7 + $0x20] sm:$0xff]
    %v401 = vld [vmem:[%s7 + $0x28] sm:$0xff]
    %v402 = vld [vmem:[%s7 + $0x30] sm:$0xff]
    %v403 = vld [vmem:[%s7 + $0x38] sm:$0xff]
    %v404 = vld [vmem:[%s7 + $0x40] sm:$0xff]
    %v405 = vld [vmem:[%s7 + $0x48] sm:$0xff]
    %v406 = vld [vmem:[%s7 + $0x50] sm:$0xff]
    %v407 = vld [vmem:[%s7 + $0x58] sm:$0xff]
    %v408 = vld [vmem:[%s7 + $0x60] sm:$0xff]
    %v409 = vld [vmem:[%s7 + $0x68] sm:$0xff]
    %v410 = vld [vmem:[%s7 + $0x70] sm:$0xff]
    %v411 = vld [vmem:[%s7 + $0x78] sm:$0xff]
    %v412 = vld [vmem:[%s1 + $0x6] sm:$0x3]
    %v414 = vperm.slane %v412, 0
    %v415 = vperm.slane %v412, 1
    %v434 = vunpack.c.l.b16 %v396
    %v435 = vunpack.c.h.b16 %v396
    %v436 = vunpack.c.l.b16 %v397
    %v437 = vunpack.c.h.b16 %v397
    %v438 = vunpack.c.l.b16 %v398
    %v439 = vunpack.c.h.b16 %v398
    %v440 = vunpack.c.l.b16 %v399
    %v441 = vunpack.c.h.b16 %v399
    %v442 = vunpack.c.l.b16 %v400
    %v443 = vunpack.c.h.b16 %v400
    %v444 = vunpack.c.l.b16 %v401
    %v445 = vunpack.c.h.b16 %v401
    %v446 = vunpack.c.l.b16 %v402
    %v447 = vunpack.c.h.b16 %v402
    %v448 = vunpack.c.l.b16 %v403
    %v449 = vunpack.c.h.b16 %v403
    %v450 = vunpack.c.l.b16 %v404
    %v451 = vunpack.c.h.b16 %v404
    %v452 = vunpack.c.l.b16 %v405
    %v453 = vunpack.c.h.b16 %v405
    %v454 = vunpack.c.l.b16 %v406
    %v455 = vunpack.c.h.b16 %v406
    %v456 = vunpack.c.l.b16 %v407
    %v457 = vunpack.c.h.b16 %v407
    %v458 = vunpack.c.l.b16 %v408
    %v459 = vunpack.c.h.b16 %v408
    %v460 = vunpack.c.l.b16 %v409
    %v461 = vunpack.c.h.b16 %v409
    %v462 = vunpack.c.l.b16 %v410
    %v463 = vunpack.c.h.b16 %v410
    %v464 = vunpack.c.l.b16 %v411
    %v465 = vunpack.c.h.b16 %v411
    %v466 = vpack.c.b16 %v436, %v434
    %v467 = vpack.c.b16 %v437, %v435
    %v468 = vpack.c.b16 %v440, %v438
    %v469 = vpack.c.b16 %v441, %v439
    %v470 = vpack.c.b16 %v444, %v442
    %v471 = vpack.c.b16 %v445, %v443
    %v472 = vpack.c.b16 %v448, %v446
    %v473 = vpack.c.b16 %v449, %v447
    %v474 = vpack.c.b16 %v452, %v450
    %v475 = vpack.c.b16 %v453, %v451
    %v476 = vpack.c.b16 %v456, %v454
    %v477 = vpack.c.b16 %v457, %v455
    %v478 = vpack.c.b16 %v460, %v458
    %v479 = vpack.c.b16 %v461, %v459
    %v480 = vpack.c.b16 %v464, %v462
    %v481 = vpack.c.b16 %v465, %v463
    %498 = vmatpush.bf16.msra.mxu0 %v480
    %499 = vmatpush.bf16.msra.mxu0 %v478
    %500 = vmatpush.bf16.msra.mxu0 %v476
    %501 = vmatpush.bf16.msra.mxu0 %v474
    %502 = vmatpush.bf16.msra.mxu0 %v472
    %503 = vmatpush.bf16.msra.mxu0 %v470
    %504 = vmatpush.bf16.msra.mxu0 %v468
    %505 = vmatpush.bf16.msra.mxu0 %v466
    %506 = vmatmul.bf16.gmra.mxu0 %v284
    %v507 = vpop.f32.mrf.mxu0
    %v508 = vadd.f32 %v414, %v507
    %v509 = vpop.f32.mrf.mxu0
    %510 = vdwg.mxu0
    %511 = vmatpush.bf16.msra.mxu0 %v481
    %512 = vmatpush.bf16.msra.mxu0 %v479
    %513 = vmatpush.bf16.msra.mxu0 %v477
    %514 = vmatpush.bf16.msra.mxu0 %v475
    %515 = vmatpush.bf16.msra.mxu0 %v473
    %516 = vmatpush.bf16.msra.mxu0 %v471
    %517 = vmatpush.bf16.msra.mxu0 %v469
    %518 = vmatpush.bf16.msra.mxu0 %v467
    %519 = vmatmul.bf16.gmra.mxu0 %v284
    %v520 = vpop.f32.mrf.mxu0
    %v521 = vadd.f32 %v415, %v520
    %v522 = vpop.f32.mrf.mxu0
    %523 = vdwg.mxu0
    %v524 = vmul.f32 %v508, 0.5
    %v525 = vmul.f32 %v521, 0.5
    %v526 = vmul.f32 %v508, 0.044715
    %v527 = vmul.f32 %v521, 0.044715
    %v528 = vmul.f32 %v526, %v508
    %v529 = vmul.f32 %v527, %v521
    %v530 = vmul.f32 %v528, %v508
    %v531 = vmul.f32 %v529, %v521
    %v532 = vadd.f32 %v508, %v530
    %v533 = vadd.f32 %v521, %v531
    %v534 = vmul.f32 %v532, 0.7978846
    %v535 = vmul.f32 %v533, 0.7978846
    %v536 = vtanh.pop %v534
    %v537 = vtanh.pop %v535
    %v538 = vadd.f32 %v536, 1.0
    %v539 = vadd.f32 %v537, 1.0
    %v540 = vmul.f32 %v524, %v538
    %v541 = vmul.f32 %v525, %v539
    %v542 = vmul.f32 %v380, %v540
    %v543 = vmul.f32 %v393, %v541
    %v544 = vld [vmem:[%s8] sm:$0xf]
    %v545 = vld [vmem:[%s8 + $0x4] sm:$0xf]
    %v546 = vld [vmem:[%s8 + $0x8] sm:$0xf]
    %v547 = vld [vmem:[%s8 + $0xc] sm:$0xf]
    %v548 = vld [vmem:[%s8 + $0x10] sm:$0xf]
    %v549 = vld [vmem:[%s8 + $0x14] sm:$0xf]
    %v550 = vld [vmem:[%s8 + $0x18] sm:$0xf]
    %v551 = vld [vmem:[%s8 + $0x1c] sm:$0xf]
    %v552 = vld [vmem:[%s8 + $0x20] sm:$0xf]
    %v553 = vld [vmem:[%s8 + $0x24] sm:$0xf]
    %v554 = vld [vmem:[%s8 + $0x28] sm:$0xf]
    %v555 = vld [vmem:[%s8 + $0x2c] sm:$0xf]
    %v556 = vld [vmem:[%s8 + $0x30] sm:$0xf]
    %v557 = vld [vmem:[%s8 + $0x34] sm:$0xf]
    %v558 = vld [vmem:[%s8 + $0x38] sm:$0xf]
    %v559 = vld [vmem:[%s8 + $0x3c] sm:$0xf]
    %v560 = vld [vmem:[%s8 + $0x40] sm:$0xf]
    %v561 = vld [vmem:[%s8 + $0x44] sm:$0xf]
    %v562 = vld [vmem:[%s8 + $0x48] sm:$0xf]
    %v563 = vld [vmem:[%s8 + $0x4c] sm:$0xf]
    %v564 = vld [vmem:[%s8 + $0x50] sm:$0xf]
    %v565 = vld [vmem:[%s8 + $0x54] sm:$0xf]
    %v566 = vld [vmem:[%s8 + $0x58] sm:$0xf]
    %v567 = vld [vmem:[%s8 + $0x5c] sm:$0xf]
    %v568 = vld [vmem:[%s8 + $0x60] sm:$0xf]
    %v569 = vld [vmem:[%s8 + $0x64] sm:$0xf]
    %v570 = vld [vmem:[%s8 + $0x68] sm:$0xf]
    %v571 = vld [vmem:[%s8 + $0x6c] sm:$0xf]
    %v572 = vld [vmem:[%s8 + $0x70] sm:$0xf]
    %v573 = vld [vmem:[%s8 + $0x74] sm:$0xf]
    %v574 = vld [vmem:[%s8 + $0x78] sm:$0xf]
    %v575 = vld [vmem:[%s8 + $0x7c] sm:$0xf]
    %v576 = vld [vmem:[%s1 + $0x8] sm:$0x1]
    %v577 = vpack.c.bf16 %v542, %v542
    %v578 = vpack.c.bf16 %v543, %v543
    %v580 = vperm.slane %v576, 0
    %v614 = vunpack.c.l.b16 %v544
    %v615 = vunpack.c.l.b16 %v545
    %v616 = vunpack.c.l.b16 %v546
    %v617 = vunpack.c.l.b16 %v547
    %v618 = vunpack.c.l.b16 %v548
    %v619 = vunpack.c.l.b16 %v549
    %v620 = vunpack.c.l.b16 %v550
    %v621 = vunpack.c.l.b16 %v551
    %v622 = vunpack.c.l.b16 %v552
    %v623 = vunpack.c.l.b16 %v553
    %v624 = vunpack.c.l.b16 %v554
    %v625 = vunpack.c.l.b16 %v555
    %v626 = vunpack.c.l.b16 %v556
    %v627 = vunpack.c.l.b16 %v557
    %v628 = vunpack.c.l.b16 %v558
    %v629 = vunpack.c.l.b16 %v559
    %v630 = vunpack.c.l.b16 %v560
    %v631 = vunpack.c.l.b16 %v561
    %v632 = vunpack.c.l.b16 %v562
    %v633 = vunpack.c.l.b16 %v563
    %v634 = vunpack.c.l.b16 %v564
    %v635 = vunpack.c.l.b16 %v565
    %v636 = vunpack.c.l.b16 %v566
    %v637 = vunpack.c.l.b16 %v567
    %v638 = vunpack.c.l.b16 %v568
    %v639 = vunpack.c.l.b16 %v569
    %v640 = vunpack.c.l.b16 %v570
    %v641 = vunpack.c.l.b16 %v571
    %v642 = vunpack.c.l.b16 %v572
    %v643 = vunpack.c.l.b16 %v573
    %v644 = vunpack.c.l.b16 %v574
    %v645 = vunpack.c.l.b16 %v575
    %v646 = vpack.c.b16 %v615, %v614
    %v647 = vpack.c.b16 %v617, %v616
    %v648 = vpack.c.b16 %v619, %v618
    %v649 = vpack.c.b16 %v621, %v620
    %v650 = vpack.c.b16 %v623, %v622
    %v651 = vpack.c.b16 %v625, %v624
    %v652 = vpack.c.b16 %v627, %v626
    %v653 = vpack.c.b16 %v629, %v628
    %v654 = vpack.c.b16 %v631, %v630
    %v655 = vpack.c.b16 %v633, %v632
    %v656 = vpack.c.b16 %v635, %v634
    %v657 = vpack.c.b16 %v637, %v636
    %v658 = vpack.c.b16 %v639, %v638
    %v659 = vpack.c.b16 %v641, %v640
    %v660 = vpack.c.b16 %v643, %v642
    %v661 = vpack.c.b16 %v645, %v644
    %678 = vmatpush.bf16.msra.mxu0 %v653
    %679 = vmatpush.bf16.msra.mxu0 %v652
    %680 = vmatpush.bf16.msra.mxu0 %v651
    %681 = vmatpush.bf16.msra.mxu0 %v650
    %682 = vmatpush.bf16.msra.mxu0 %v649
    %683 = vmatpush.bf16.msra.mxu0 %v648
    %684 = vmatpush.bf16.msra.mxu0 %v647
    %685 = vmatpush.bf16.msra.mxu0 %v646
    %686 = vmatmul.bf16.gmra.mxu0 %v577
    %v687 = vpop.f32.mrf.mxu0
    %v688 = vadd.f32 %v580, %v687
    %v689 = vpop.f32.mrf.mxu0
    %690 = vdwg.mxu0
    %691 = vmatpush.bf16.msra.mxu0 %v661
    %692 = vmatpush.bf16.msra.mxu0 %v660
    %693 = vmatpush.bf16.msra.mxu0 %v659
    %694 = vmatpush.bf16.msra.mxu0 %v658
    %695 = vmatpush.bf16.msra.mxu0 %v657
    %696 = vmatpush.bf16.msra.mxu0 %v656
    %697 = vmatpush.bf16.msra.mxu0 %v655
    %698 = vmatpush.bf16.msra.mxu0 %v654
    %699 = vmatmul.bf16.gmra.mxu0 %v578
    %v700 = vpop.f32.mrf.mxu0
    %v701 = vadd.f32 %v688, %v700
    %v702 = vpop.f32.mrf.mxu0
    %703 = vdwg.mxu0
    %vm704 = vcmp.ge.f32.partialorder %v701, 0.0
    %v705 = vmul.f32 %v701, 0.01
    %v706 = vsel %vm704, %v701, %v705
    %v707 = vld [vmem:[%s9] sm:$0xf]
    %v708 = vld [vmem:[%s9 + $0x4] sm:$0xf]
    %v709 = vld [vmem:[%s9 + $0x8] sm:$0xf]
    %v710 = vld [vmem:[%s9 + $0xc] sm:$0xf]
    %v711 = vld [vmem:[%s9 + $0x10] sm:$0xf]
    %v712 = vld [vmem:[%s9 + $0x14] sm:$0xf]
    %v713 = vld [vmem:[%s9 + $0x18] sm:$0xf]
    %v714 = vld [vmem:[%s9 + $0x1c] sm:$0xf]
    %v715 = vld [vmem:[%s9 + $0x20] sm:$0xf]
    %v716 = vld [vmem:[%s9 + $0x24] sm:$0xf]
    %v717 = vld [vmem:[%s9 + $0x28] sm:$0xf]
    %v718 = vld [vmem:[%s9 + $0x2c] sm:$0xf]
    %v719 = vld [vmem:[%s9 + $0x30] sm:$0xf]
    %v720 = vld [vmem:[%s9 + $0x34] sm:$0xf]
    %v721 = vld [vmem:[%s9 + $0x38] sm:$0xf]
    %v722 = vld [vmem:[%s9 + $0x3c] sm:$0xf]
    %v723 = vld [vmem:[%s1 + $0x9] sm:$0x1]
    %v724 = vpack.c.bf16 %v706, %v706
    %v726 = vperm.slane %v723, 0
    %v744 = vunpack.c.l.b16 %v707
    %v745 = vunpack.c.l.b16 %v708
    %v746 = vunpack.c.l.b16 %v709
    %v747 = vunpack.c.l.b16 %v710
    %v748 = vunpack.c.l.b16 %v711
    %v749 = vunpack.c.l.b16 %v712
    %v750 = vunpack.c.l.b16 %v713
    %v751 = vunpack.c.l.b16 %v714
    %v752 = vunpack.c.l.b16 %v715
    %v753 = vunpack.c.l.b16 %v716
    %v754 = vunpack.c.l.b16 %v717
    %v755 = vunpack.c.l.b16 %v718
    %v756 = vunpack.c.l.b16 %v719
    %v757 = vunpack.c.l.b16 %v720
    %v758 = vunpack.c.l.b16 %v721
    %v759 = vunpack.c.l.b16 %v722
    %v760 = vpack.c.b16 %v745, %v744
    %v761 = vpack.c.b16 %v747, %v746
    %v762 = vpack.c.b16 %v749, %v748
    %v763 = vpack.c.b16 %v751, %v750
    %v764 = vpack.c.b16 %v753, %v752
    %v765 = vpack.c.b16 %v755, %v754
    %v766 = vpack.c.b16 %v757, %v756
    %v767 = vpack.c.b16 %v759, %v758
    %776 = vmatpush.bf16.msra.mxu0 %v767
    %777 = vmatpush.bf16.msra.mxu0 %v766
    %778 = vmatpush.bf16.msra.mxu0 %v765
    %779 = vmatpush.bf16.msra.mxu0 %v764
    %780 = vmatpush.bf16.msra.mxu0 %v763
    %781 = vmatpush.bf16.msra.mxu0 %v762
    %782 = vmatpush.bf16.msra.mxu0 %v761
    %783 = vmatpush.bf16.msra.mxu0 %v760
    %784 = vmatmul.bf16.gmra.mxu0 %v724
    %v785 = vpop.f32.mrf.mxu0
    %v786 = vadd.f32 %v726, %v785
    %v787 = vpop.f32.mrf.mxu0
    %788 = vdwg.mxu0
    %vm789 = vcmp.ge.f32.partialorder %v786, 0.0
    %v790 = vmul.f32 %v786, 0.01
    %v791 = vsel %vm789, %v786, %v790
    %v792 = vld [vmem:[%s10] sm:$0xf]
    %v793 = vld [vmem:[%s10 + $0x4] sm:$0xf]
    %v794 = vld [vmem:[%s10 + $0x8] sm:$0xf]
    %v795 = vld [vmem:[%s10 + $0xc] sm:$0xf]
    %v796 = vld [vmem:[%s1 + $0xa] sm:$0x1]
    %v797 = vpack.c.bf16 %v791, %v791
    %v799 = vperm.slane %v796, 0
    %v805 = vunpack.c.l.b16 %v792
    %v806 = vunpack.c.l.b16 %v793
    %v807 = vunpack.c.l.b16 %v794
    %v808 = vunpack.c.l.b16 %v795
    %v809 = vpack.c.b16 %v806, %v805
    %v810 = vpack.c.b16 %v808, %v807
    %v814 = vsel %vm213, %v797, 0
    %816 = vmatpush.bf16.msra.mxu0 0
    %817 = vmatpush.bf16.msra.mxu0 0
    %818 = vmatpush.bf16.msra.mxu0 0
    %819 = vmatpush.bf16.msra.mxu0 0
    %820 = vmatpush.bf16.msra.mxu0 0
    %821 = vmatpush.bf16.msra.mxu0 0
    %822 = vmatpush.bf16.msra.mxu0 %v810
    %823 = vmatpush.bf16.msra.mxu0 %v809
    %824 = vmatmul.bf16.gmra.mxu0 %v814
    %v825 = vpop.f32.mrf.mxu0
    %v826 = vadd.f32 %v799, %v825
    %v827 = vpop.f32.mrf.mxu0
    %828 = vdwg.mxu0
    %vm829 = vcmp.ge.f32.partialorder %v826, 0.0
    %v830 = vmul.f32 %v826, 0.01
    %v831 = vsel %vm829, %v826, %v830
    %v832 = vld [vmem:[%s11] sm:$0xf]
    %v833 = vld [vmem:[%s11 + $0x4] sm:$0xf]
    %v834 = vld [vmem:[%s1 + $0xb] sm:$0x1]
    %v835 = vpack.c.bf16 %v831, %v831
    %v837 = vperm.slane %v834, 0
    %v841 = vunpack.c.l.b16 %v832
    %v842 = vunpack.c.l.b16 %v833
    %v843 = vpack.c.b16 %v842, %v841
    %v846 = vsel %vm246, %v835, 0
    %848 = vmatpush.bf16.msra.mxu0 0
    %849 = vmatpush.bf16.msra.mxu0 0
    %850 = vmatpush.bf16.msra.mxu0 0
    %851 = vmatpush.bf16.msra.mxu0 0
    %852 = vmatpush.bf16.msra.mxu0 0
    %853 = vmatpush.bf16.msra.mxu0 0
    %854 = vmatpush.bf16.msra.mxu0 0
    %855 = vmatpush.bf16.msra.mxu0 %v843
    %856 = vmatmul.bf16.gmra.mxu0 %v846
    %v857 = vpop.f32.mrf.mxu0
    %v858 = vadd.f32 %v837, %v857
    %v859 = vpop.f32.mrf.mxu0
    %860 = vdwg.mxu0
    %vm861 = vcmp.ge.f32.partialorder %v858, 0.0
    %v862 = vmul.f32 %v858, 0.01
    %v863 = vsel %vm861, %v858, %v862
    %v864 = vadd.f32 %v706, %v863
    %v865 = vld [vmem:[%s12] sm:$0xf]
    %v866 = vld [vmem:[%s12 + $0x4] sm:$0xf]
    %v867 = vld [vmem:[%s12 + $0x8] sm:$0xf]
    %v868 = vld [vmem:[%s12 + $0xc] sm:$0xf]
    %v869 = vld [vmem:[%s12 + $0x10] sm:$0xf]
    %v870 = vld [vmem:[%s12 + $0x14] sm:$0xf]
    %v871 = vld [vmem:[%s12 + $0x18] sm:$0xf]
    %v872 = vld [vmem:[%s12 + $0x1c] sm:$0xf]
    %v873 = vld [vmem:[%s12 + $0x20] sm:$0xf]
    %v874 = vld [vmem:[%s12 + $0x24] sm:$0xf]
    %v875 = vld [vmem:[%s12 + $0x28] sm:$0xf]
    %v876 = vld [vmem:[%s12 + $0x2c] sm:$0xf]
    %v877 = vld [vmem:[%s12 + $0x30] sm:$0xf]
    %v878 = vld [vmem:[%s12 + $0x34] sm:$0xf]
    %v879 = vld [vmem:[%s12 + $0x38] sm:$0xf]
    %v880 = vld [vmem:[%s12 + $0x3c] sm:$0xf]
    %v881 = vld [vmem:[%s1 + $0xc] sm:$0x1]
    %v882 = vpack.c.bf16 %v864, %v864
    %v884 = vperm.slane %v881, 0
    %v902 = vunpack.c.l.b16 %v865
    %v903 = vunpack.c.l.b16 %v866
    %v904 = vunpack.c.l.b16 %v867
    %v905 = vunpack.c.l.b16 %v868
    %v906 = vunpack.c.l.b16 %v869
    %v907 = vunpack.c.l.b16 %v870
    %v908 = vunpack.c.l.b16 %v871
    %v909 = vunpack.c.l.b16 %v872
    %v910 = vunpack.c.l.b16 %v873
    %v911 = vunpack.c.l.b16 %v874
    %v912 = vunpack.c.l.b16 %v875
    %v913 = vunpack.c.l.b16 %v876
    %v914 = vunpack.c.l.b16 %v877
    %v915 = vunpack.c.l.b16 %v878
    %v916 = vunpack.c.l.b16 %v879
    %v917 = vunpack.c.l.b16 %v880
    %v918 = vpack.c.b16 %v903, %v902
    %v919 = vpack.c.b16 %v905, %v904
    %v920 = vpack.c.b16 %v907, %v906
    %v921 = vpack.c.b16 %v909, %v908
    %v922 = vpack.c.b16 %v911, %v910
    %v923 = vpack.c.b16 %v913, %v912
    %v924 = vpack.c.b16 %v915, %v914
    %v925 = vpack.c.b16 %v917, %v916
    %934 = vmatpush.bf16.msra.mxu0 %v925
    %935 = vmatpush.bf16.msra.mxu0 %v924
    %936 = vmatpush.bf16.msra.mxu0 %v923
    %937 = vmatpush.bf16.msra.mxu0 %v922
    %938 = vmatpush.bf16.msra.mxu0 %v921
    %939 = vmatpush.bf16.msra.mxu0 %v920
    %940 = vmatpush.bf16.msra.mxu0 %v919
    %941 = vmatpush.bf16.msra.mxu0 %v918
    %942 = vmatmul.bf16.gmra.mxu0 %v882
    %v943 = vpop.f32.mrf.mxu0
    %v944 = vadd.f32 %v884, %v943
    %v945 = vpop.f32.mrf.mxu0
    %946 = vdwg.mxu0
    %v947 = vld [vmem:[%s13] sm:$0xf]
    %v948 = vld [vmem:[%s13 + $0x4] sm:$0xf]
    %v949 = vld [vmem:[%s13 + $0x8] sm:$0xf]
    %v950 = vld [vmem:[%s13 + $0xc] sm:$0xf]
    %v951 = vld [vmem:[%s13 + $0x10] sm:$0xf]
    %v952 = vld [vmem:[%s13 + $0x14] sm:$0xf]
    %v953 = vld [vmem:[%s13 + $0x18] sm:$0xf]
    %v954 = vld [vmem:[%s13 + $0x1c] sm:$0xf]
    %v955 = vld [vmem:[%s13 + $0x20] sm:$0xf]
    %v956 = vld [vmem:[%s13 + $0x24] sm:$0xf]
    %v957 = vld [vmem:[%s13 + $0x28] sm:$0xf]
    %v958 = vld [vmem:[%s13 + $0x2c] sm:$0xf]
    %v959 = vld [vmem:[%s13 + $0x30] sm:$0xf]
    %v960 = vld [vmem:[%s13 + $0x34] sm:$0xf]
    %v961 = vld [vmem:[%s13 + $0x38] sm:$0xf]
    %v962 = vld [vmem:[%s13 + $0x3c] sm:$0xf]
    %v963 = vld [vmem:[%s1 + $0xd] sm:$0x1]
    %v965 = vperm.slane %v963, 0
    %v983 = vunpack.c.l.b16 %v947
    %v984 = vunpack.c.l.b16 %v948
    %v985 = vunpack.c.l.b16 %v949
    %v986 = vunpack.c.l.b16 %v950
    %v987 = vunpack.c.l.b16 %v951
    %v988 = vunpack.c.l.b16 %v952
    %v989 = vunpack.c.l.b16 %v953
    %v990 = vunpack.c.l.b16 %v954
    %v991 = vunpack.c.l.b16 %v955
    %v992 = vunpack.c.l.b16 %v956
    %v993 = vunpack.c.l.b16 %v957
    %v994 = vunpack.c.l.b16 %v958
    %v995 = vunpack.c.l.b16 %v959
    %v996 = vunpack.c.l.b16 %v960
    %v997 = vunpack.c.l.b16 %v961
    %v998 = vunpack.c.l.b16 %v962
    %v999 = vpack.c.b16 %v984, %v983
    %v1000 = vpack.c.b16 %v986, %v985
    %v1001 = vpack.c.b16 %v988, %v987
    %v1002 = vpack.c.b16 %v990, %v989
    %v1003 = vpack.c.b16 %v992, %v991
    %v1004 = vpack.c.b16 %v994, %v993
    %v1005 = vpack.c.b16 %v996, %v995
    %v1006 = vpack.c.b16 %v998, %v997
    %1015 = vmatpush.bf16.msra.mxu0 %v1006
    %1016 = vmatpush.bf16.msra.mxu0 %v1005
    %1017 = vmatpush.bf16.msra.mxu0 %v1004
    %1018 = vmatpush.bf16.msra.mxu0 %v1003
    %1019 = vmatpush.bf16.msra.mxu0 %v1002
    %1020 = vmatpush.bf16.msra.mxu0 %v1001
    %1021 = vmatpush.bf16.msra.mxu0 %v1000
    %1022 = vmatpush.bf16.msra.mxu0 %v999
    %1023 = vmatmul.bf16.gmra.mxu0 %v882
    %v1024 = vpop.f32.mrf.mxu0
    %v1025 = vadd.f32 %v965, %v1024
    %v1026 = vpop.f32.mrf.mxu0
    %1027 = vdwg.mxu0
    %v1028 = vmul.f32 %v1025, 0.5
    %v1029 = vmul.f32 %v1025, 0.044715
    %v1030 = vmul.f32 %v1029, %v1025
    %v1031 = vmul.f32 %v1030, %v1025
    %v1032 = vadd.f32 %v1025, %v1031
    %v1033 = vmul.f32 %v1032, 0.7978846
    %v1034 = vtanh.pop %v1033
    %v1035 = vadd.f32 %v1034, 1.0
    %v1036 = vmul.f32 %v1028, %v1035
    %v1037 = vmul.f32 %v944, %v1036
    %v1038 = vld [vmem:[%s14] sm:$0xf]
    %v1039 = vld [vmem:[%s14 + $0x4] sm:$0xf]
    %v1040 = vld [vmem:[%s14 + $0x8] sm:$0xf]
    %v1041 = vld [vmem:[%s14 + $0xc] sm:$0xf]
    %v1042 = vld [vmem:[%s14 + $0x10] sm:$0xf]
    %v1043 = vld [vmem:[%s14 + $0x14] sm:$0xf]
    %v1044 = vld [vmem:[%s14 + $0x18] sm:$0xf]
    %v1045 = vld [vmem:[%s14 + $0x1c] sm:$0xf]
    %v1046 = vld [vmem:[%s1 + $0xe] sm:$0x1]
    %v1047 = vpack.c.bf16 %v1037, %v1037
    %v1049 = vperm.slane %v1046, 0
    %v1059 = vunpack.c.l.b16 %v1038
    %v1060 = vunpack.c.l.b16 %v1039
    %v1061 = vunpack.c.l.b16 %v1040
    %v1062 = vunpack.c.l.b16 %v1041
    %v1063 = vunpack.c.l.b16 %v1042
    %v1064 = vunpack.c.l.b16 %v1043
    %v1065 = vunpack.c.l.b16 %v1044
    %v1066 = vunpack.c.l.b16 %v1045
    %v1067 = vpack.c.b16 %v1060, %v1059
    %v1068 = vpack.c.b16 %v1062, %v1061
    %v1069 = vpack.c.b16 %v1064, %v1063
    %v1070 = vpack.c.b16 %v1066, %v1065
    %vm1075 = vcmask 523264
    %v1077 = vsel %vm1075, %v1047, 0
    %1079 = vmatpush.bf16.msra.mxu0 0
    %1080 = vmatpush.bf16.msra.mxu0 0
    %1081 = vmatpush.bf16.msra.mxu0 0
    %1082 = vmatpush.bf16.msra.mxu0 0
    %1083 = vmatpush.bf16.msra.mxu0 %v1070
    %1084 = vmatpush.bf16.msra.mxu0 %v1069
    %1085 = vmatpush.bf16.msra.mxu0 %v1068
    %1086 = vmatpush.bf16.msra.mxu0 %v1067
    %1087 = vmatmul.bf16.gmra.mxu0 %v1077
    %v1088 = vpop.f32.mrf.mxu0
    %v1089 = vadd.f32 %v1049, %v1088
    %v1090 = vpop.f32.mrf.mxu0
    %1091 = vdwg.mxu0
    %vm1092 = vcmp.ge.f32.partialorder %v1089, 0.0
    %v1093 = vmul.f32 %v1089, 0.01
    %v1094 = vsel %vm1092, %v1089, %v1093
    %v1095 = vld [vmem:[%s15] sm:$0xff]
    %v1096 = vld [vmem:[%s15 + $0x8] sm:$0xff]
    %v1097 = vld [vmem:[%s15 + $0x10] sm:$0xf]
    %v1098 = vld [vmem:[%s15 + $0x14] sm:$0xff]
    %v1099 = vld [vmem:[%s15 + $0x1c] sm:$0xff]
    %v1100 = vld [vmem:[%s15 + $0x24] sm:$0xf]
    %v1101 = vld [vmem:[%s15 + $0x28] sm:$0xff]
    %v1102 = vld [vmem:[%s15 + $0x30] sm:$0xff]
    %v1103 = vld [vmem:[%s15 + $0x38] sm:$0xf]
    %v1104 = vld [vmem:[%s15 + $0x3c] sm:$0xff]
    %v1105 = vld [vmem:[%s15 + $0x44] sm:$0xff]
    %v1106 = vld [vmem:[%s15 + $0x4c] sm:$0xf]
    %v1107 = vld [vmem:[%s1 + $0xf] sm:$0x1f]
    %v1108 = vpack.c.bf16 %v1094, %v1094
    %v1110 = vperm.slane %v1107, 0
    %v1111 = vperm.slane %v1107, 1
    %v1112 = vperm.slane %v1107, 2
    %v1113 = vperm.slane %v1107, 3
    %v1114 = vperm.slane %v1107, 4
    %v1132 = vunpack.c.l.b16 %v1095
    %v1133 = vunpack.c.h.b16 %v1095
    %v1134 = vunpack.c.l.b16 %v1096
    %v1135 = vunpack.c.h.b16 %v1096
    %v1136 = vunpack.c.l.b16 %v1097
    %v1137 = vunpack.c.l.b16 %v1098
    %v1138 = vunpack.c.h.b16 %v1098
    %v1139 = vunpack.c.l.b16 %v1099
    %v1140 = vunpack.c.h.b16 %v1099
    %v1141 = vunpack.c.l.b16 %v1100
    %v1142 = vunpack.c.l.b16 %v1101
    %v1143 = vunpack.c.h.b16 %v1101
    %v1144 = vunpack.c.l.b16 %v1102
    %v1145 = vunpack.c.h.b16 %v1102
    %v1146 = vunpack.c.l.b16 %v1103
    %v1147 = vunpack.c.l.b16 %v1104
    %v1148 = vunpack.c.h.b16 %v1104
    %v1149 = vunpack.c.l.b16 %v1105
    %v1150 = vunpack.c.h.b16 %v1105
    %v1151 = vunpack.c.l.b16 %v1106
    %v1152 = vpack.c.b16 %v1137, %v1132
    %v1153 = vpack.c.b16 %v1138, %v1133
    %v1154 = vpack.c.b16 %v1139, %v1134
    %v1155 = vpack.c.b16 %v1140, %v1135
    %v1156 = vpack.c.b16 %v1141, %v1136
    %v1157 = vpack.c.b16 %v1147, %v1142
    %v1158 = vpack.c.b16 %v1148, %v1143
    %v1159 = vpack.c.b16 %v1149, %v1144
    %v1160 = vpack.c.b16 %v1150, %v1145
    %v1161 = vpack.c.b16 %v1151, %v1146
    %v1173 = vsel %vm213, %v1108, 0
    %1175 = vmatpush.bf16.msra.mxu0 0
    %1176 = vmatpush.bf16.msra.mxu0 0
    %1177 = vmatpush.bf16.msra.mxu0 0
    %1178 = vmatpush.bf16.msra.mxu0 0
    %1179 = vmatpush.bf16.msra.mxu0 0
    %1180 = vmatpush.bf16.msra.mxu0 0
    %1181 = vmatpush.bf16.msra.mxu0 %v1157
    %1182 = vmatpush.bf16.msra.mxu0 %v1152
    %1183 = vmatmul.bf16.gmra.mxu0 %v1173
    %v1184 = vpop.f32.mrf.mxu0
    %v1185 = vadd.f32 %v1110, %v1184
    %v1186 = vpop.f32.mrf.mxu0
    %1187 = vdwg.mxu0
    %1188 = vmatpush.bf16.msra.mxu0 0
    %1189 = vmatpush.bf16.msra.mxu0 0
    %1190 = vmatpush.bf16.msra.mxu0 0
    %1191 = vmatpush.bf16.msra.mxu0 0
    %1192 = vmatpush.bf16.msra.mxu0 0
    %1193 = vmatpush.bf16.msra.mxu0 0
    %1194 = vmatpush.bf16.msra.mxu0 %v1158
    %1195 = vmatpush.bf16.msra.mxu0 %v1153
    %1196 = vmatmul.bf16.gmra.mxu0 %v1173
    %v1197 = vpop.f32.mrf.mxu0
    %v1198 = vadd.f32 %v1111, %v1197
    %v1199 = vpop.f32.mrf.mxu0
    %1200 = vdwg.mxu0
    %1201 = vmatpush.bf16.msra.mxu0 0
    %1202 = vmatpush.bf16.msra.mxu0 0
    %1203 = vmatpush.bf16.msra.mxu0 0
    %1204 = vmatpush.bf16.msra.mxu0 0
    %1205 = vmatpush.bf16.msra.mxu0 0
    %1206 = vmatpush.bf16.msra.mxu0 0
    %1207 = vmatpush.bf16.msra.mxu0 %v1159
    %1208 = vmatpush.bf16.msra.mxu0 %v1154
    %1209 = vmatmul.bf16.gmra.mxu0 %v1173
    %v1210 = vpop.f32.mrf.mxu0
    %v1211 = vadd.f32 %v1112, %v1210
    %v1212 = vpop.f32.mrf.mxu0
    %1213 = vdwg.mxu0
    %1214 = vmatpush.bf16.msra.mxu0 0
    %1215 = vmatpush.bf16.msra.mxu0 0
    %1216 = vmatpush.bf16.msra.mxu0 0
    %1217 = vmatpush.bf16.msra.mxu0 0
    %1218 = vmatpush.bf16.msra.mxu0 0
    %1219 = vmatpush.bf16.msra.mxu0 0
    %1220 = vmatpush.bf16.msra.mxu0 %v1160
    %1221 = vmatpush.bf16.msra.mxu0 %v1155
    %1222 = vmatmul.bf16.gmra.mxu0 %v1173
    %v1223 = vpop.f32.mrf.mxu0
    %v1224 = vadd.f32 %v1113, %v1223
    %v1225 = vpop.f32.mrf.mxu0
    %1226 = vdwg.mxu0
    %1227 = vmatpush.bf16.msra.mxu0 0
    %1228 = vmatpush.bf16.msra.mxu0 0
    %1229 = vmatpush.bf16.msra.mxu0 0
    %1230 = vmatpush.bf16.msra.mxu0 0
    %1231 = vmatpush.bf16.msra.mxu0 0
    %1232 = vmatpush.bf16.msra.mxu0 0
    %1233 = vmatpush.bf16.msra.mxu0 %v1161
    %1234 = vmatpush.bf16.msra.mxu0 %v1156
    %1235 = vmatmul.bf16.gmra.mxu0 %v1173
    %v1236 = vpop.f32.mrf.mxu0
    %v1237 = vadd.f32 %v1114, %v1236
    %v1238 = vpop.f32.mrf.mxu0
    %1239 = vdwg.mxu0
    %v1240 = vld [vmem:[%s16] sm:$0xff]
    %v1241 = vld [vmem:[%s16 + $0x8] sm:$0xff]
    %v1242 = vld [vmem:[%s16 + $0x10] sm:$0xf]
    %v1243 = vld [vmem:[%s16 + $0x14] sm:$0xff]
    %v1244 = vld [vmem:[%s16 + $0x1c] sm:$0xff]
    %v1245 = vld [vmem:[%s16 + $0x24] sm:$0xf]
    %v1246 = vld [vmem:[%s16 + $0x28] sm:$0xff]
    %v1247 = vld [vmem:[%s16 + $0x30] sm:$0xff]
    %v1248 = vld [vmem:[%s16 + $0x38] sm:$0xf]
    %v1249 = vld [vmem:[%s16 + $0x3c] sm:$0xff]
    %v1250 = vld [vmem:[%s16 + $0x44] sm:$0xff]
    %v1251 = vld [vmem:[%s16 + $0x4c] sm:$0xf]
    %v1252 = vld [vmem:[%s1 + $0x14] sm:$0x1f]
    %v1254 = vperm.slane %v1252, 0
    %v1255 = vperm.slane %v1252, 1
    %v1256 = vperm.slane %v1252, 2
    %v1257 = vperm.slane %v1252, 3
    %v1258 = vperm.slane %v1252, 4
    %v1276 = vunpack.c.l.b16 %v1240
    %v1277 = vunpack.c.h.b16 %v1240
    %v1278 = vunpack.c.l.b16 %v1241
    %v1279 = vunpack.c.h.b16 %v1241
    %v1280 = vunpack.c.l.b16 %v1242
    %v1281 = vunpack.c.l.b16 %v1243
    %v1282 = vunpack.c.h.b16 %v1243
    %v1283 = vunpack.c.l.b16 %v1244
    %v1284 = vunpack.c.h.b16 %v1244
    %v1285 = vunpack.c.l.b16 %v1245
    %v1286 = vunpack.c.l.b16 %v1246
    %v1287 = vunpack.c.h.b16 %v1246
    %v1288 = vunpack.c.l.b16 %v1247
    %v1289 = vunpack.c.h.b16 %v1247
    %v1290 = vunpack.c.l.b16 %v1248
    %v1291 = vunpack.c.l.b16 %v1249
    %v1292 = vunpack.c.h.b16 %v1249
    %v1293 = vunpack.c.l.b16 %v1250
    %v1294 = vunpack.c.h.b16 %v1250
    %v1295 = vunpack.c.l.b16 %v1251
    %v1296 = vpack.c.b16 %v1281, %v1276
    %v1297 = vpack.c.b16 %v1282, %v1277
    %v1298 = vpack.c.b16 %v1283, %v1278
    %v1299 = vpack.c.b16 %v1284, %v1279
    %v1300 = vpack.c.b16 %v1285, %v1280
    %v1301 = vpack.c.b16 %v1291, %v1286
    %v1302 = vpack.c.b16 %v1292, %v1287
    %v1303 = vpack.c.b16 %v1293, %v1288
    %v1304 = vpack.c.b16 %v1294, %v1289
    %v1305 = vpack.c.b16 %v1295, %v1290
    %1316 = vmatpush.bf16.msra.mxu0 0
    %1317 = vmatpush.bf16.msra.mxu0 0
    %1318 = vmatpush.bf16.msra.mxu0 0
    %1319 = vmatpush.bf16.msra.mxu0 0
    %1320 = vmatpush.bf16.msra.mxu0 0
    %1321 = vmatpush.bf16.msra.mxu0 0
    %1322 = vmatpush.bf16.msra.mxu0 %v1301
    %1323 = vmatpush.bf16.msra.mxu0 %v1296
    %1324 = vmatmul.bf16.gmra.mxu0 %v1173
    %v1325 = vpop.f32.mrf.mxu0
    %v1326 = vadd.f32 %v1254, %v1325
    %v1327 = vpop.f32.mrf.mxu0
    %1328 = vdwg.mxu0
    %1329 = vmatpush.bf16.msra.mxu0 0
    %1330 = vmatpush.bf16.msra.mxu0 0
    %1331 = vmatpush.bf16.msra.mxu0 0
    %1332 = vmatpush.bf16.msra.mxu0 0
    %1333 = vmatpush.bf16.msra.mxu0 0
    %1334 = vmatpush.bf16.msra.mxu0 0
    %1335 = vmatpush.bf16.msra.mxu0 %v1302
    %1336 = vmatpush.bf16.msra.mxu0 %v1297
    %1337 = vmatmul.bf16.gmra.mxu0 %v1173
    %v1338 = vpop.f32.mrf.mxu0
    %v1339 = vadd.f32 %v1255, %v1338
    %v1340 = vpop.f32.mrf.mxu0
    %1341 = vdwg.mxu0
    %1342 = vmatpush.bf16.msra.mxu0 0
    %1343 = vmatpush.bf16.msra.mxu0 0
    %1344 = vmatpush.bf16.msra.mxu0 0
    %1345 = vmatpush.bf16.msra.mxu0 0
    %1346 = vmatpush.bf16.msra.mxu0 0
    %1347 = vmatpush.bf16.msra.mxu0 0
    %1348 = vmatpush.bf16.msra.mxu0 %v1303
    %1349 = vmatpush.bf16.msra.mxu0 %v1298
    %1350 = vmatmul.bf16.gmra.mxu0 %v1173
    %v1351 = vpop.f32.mrf.mxu0
    %v1352 = vadd.f32 %v1256, %v1351
    %v1353 = vpop.f32.mrf.mxu0
    %1354 = vdwg.mxu0
    %1355 = vmatpush.bf16.msra.mxu0 0
    %1356 = vmatpush.bf16.msra.mxu0 0
    %1357 = vmatpush.bf16.msra.mxu0 0
    %1358 = vmatpush.bf16.msra.mxu0 0
    %1359 = vmatpush.bf16.msra.mxu0 0
    %1360 = vmatpush.bf16.msra.mxu0 0
    %1361 = vmatpush.bf16.msra.mxu0 %v1304
    %1362 = vmatpush.bf16.msra.mxu0 %v1299
    %1363 = vmatmul.bf16.gmra.mxu0 %v1173
    %v1364 = vpop.f32.mrf.mxu0
    %v1365 = vadd.f32 %v1257, %v1364
    %v1366 = vpop.f32.mrf.mxu0
    %1367 = vdwg.mxu0
    %1368 = vmatpush.bf16.msra.mxu0 0
    %1369 = vmatpush.bf16.msra.mxu0 0
    %1370 = vmatpush.bf16.msra.mxu0 0
    %1371 = vmatpush.bf16.msra.mxu0 0
    %1372 = vmatpush.bf16.msra.mxu0 0
    %1373 = vmatpush.bf16.msra.mxu0 0
    %1374 = vmatpush.bf16.msra.mxu0 %v1305
    %1375 = vmatpush.bf16.msra.mxu0 %v1300
    %1376 = vmatmul.bf16.gmra.mxu0 %v1173
    %v1377 = vpop.f32.mrf.mxu0
    %v1378 = vadd.f32 %v1258, %v1377
    %v1379 = vpop.f32.mrf.mxu0
    %1380 = vdwg.mxu0
    %v1381 = vmul.f32 %v1326, 0.5
    %v1382 = vmul.f32 %v1339, 0.5
    %v1383 = vmul.f32 %v1352, 0.5
    %v1384 = vmul.f32 %v1365, 0.5
    %v1385 = vmul.f32 %v1378, 0.5
    %v1386 = vmul.f32 %v1326, 0.044715
    %v1387 = vmul.f32 %v1339, 0.044715
    %v1388 = vmul.f32 %v1352, 0.044715
    %v1389 = vmul.f32 %v1365, 0.044715
    %v1390 = vmul.f32 %v1378, 0.044715
    %v1391 = vmul.f32 %v1386, %v1326
    %v1392 = vmul.f32 %v1387, %v1339
    %v1393 = vmul.f32 %v1388, %v1352
    %v1394 = vmul.f32 %v1389, %v1365
    %v1395 = vmul.f32 %v1390, %v1378
    %v1396 = vmul.f32 %v1391, %v1326
    %v1397 = vmul.f32 %v1392, %v1339
    %v1398 = vmul.f32 %v1393, %v1352
    %v1399 = vmul.f32 %v1394, %v1365
    %v1400 = vmul.f32 %v1395, %v1378
    %v1401 = vadd.f32 %v1326, %v1396
    %v1402 = vadd.f32 %v1339, %v1397
    %v1403 = vadd.f32 %v1352, %v1398
    %v1404 = vadd.f32 %v1365, %v1399
    %v1405 = vadd.f32 %v1378, %v1400
    %v1406 = vmul.f32 %v1401, 0.7978846
    %v1407 = vmul.f32 %v1402, 0.7978846
    %v1408 = vmul.f32 %v1403, 0.7978846
    %v1409 = vmul.f32 %v1404, 0.7978846
    %v1410 = vmul.f32 %v1405, 0.7978846
    %v1411 = vtanh.pop %v1406
    %v1412 = vtanh.pop %v1407
    %v1413 = vtanh.pop %v1408
    %v1414 = vtanh.pop %v1409
    %v1415 = vtanh.pop %v1410
    %v1416 = vadd.f32 %v1411, 1.0
    %v1417 = vadd.f32 %v1412, 1.0
    %v1418 = vadd.f32 %v1413, 1.0
    %v1419 = vadd.f32 %v1414, 1.0
    %v1420 = vadd.f32 %v1415, 1.0
    %v1421 = vmul.f32 %v1381, %v1416
    %v1422 = vmul.f32 %v1382, %v1417
    %v1423 = vmul.f32 %v1383, %v1418
    %v1424 = vmul.f32 %v1384, %v1419
    %v1425 = vmul.f32 %v1385, %v1420
    %v1426 = vmul.f32 %v1185, %v1421
    %v1427 = vmul.f32 %v1198, %v1422
    %v1428 = vmul.f32 %v1211, %v1423
    %v1429 = vmul.f32 %v1224, %v1424
    %v1430 = vmul.f32 %v1237, %v1425
    %v1431 = vld [vmem:[%s17] sm:$0xff]
    %v1432 = vld [vmem:[%s17 + $0x8] sm:$0xff]
    %v1433 = vld [vmem:[%s17 + $0x10] sm:$0xff]
    %v1434 = vld [vmem:[%s17 + $0x18] sm:$0xff]
    %v1435 = vld [vmem:[%s17 + $0x20] sm:$0xff]
    %v1436 = vld [vmem:[%s17 + $0x28] sm:$0xff]
    %v1437 = vld [vmem:[%s17 + $0x30] sm:$0xff]
    %v1438 = vld [vmem:[%s17 + $0x38] sm:$0xff]
    %v1439 = vld [vmem:[%s17 + $0x40] sm:$0xff]
    %v1440 = vld [vmem:[%s17 + $0x48] sm:$0xff]
    %v1441 = vld [vmem:[%s17 + $0x50] sm:$0xff]
    %v1442 = vld [vmem:[%s17 + $0x58] sm:$0xff]
    %v1443 = vld [vmem:[%s17 + $0x60] sm:$0xff]
    %v1444 = vld [vmem:[%s17 + $0x68] sm:$0xff]
    %v1445 = vld [vmem:[%s17 + $0x70] sm:$0xff]
    %v1446 = vld [vmem:[%s17 + $0x78] sm:$0xff]
    %v1447 = vld [vmem:[%s17 + $0x80] sm:$0xff]
    %v1448 = vld [vmem:[%s17 + $0x88] sm:$0xff]
    %v1449 = vld [vmem:[%s17 + $0x90] sm:$0xff]
    %v1450 = vld [vmem:[%s17 + $0x98] sm:$0xff]
    %v1451 = vld [vmem:[%s17 + $0xa0] sm:$0xff]
    %v1452 = vld [vmem:[%s17 + $0xa8] sm:$0xff]
    %v1453 = vld [vmem:[%s17 + $0xb0] sm:$0xff]
    %v1454 = vld [vmem:[%s17 + $0xb8] sm:$0xff]
    %v1455 = vld [vmem:[%s17 + $0xc0] sm:$0xff]
    %v1456 = vld [vmem:[%s17 + $0xc8] sm:$0xff]
    %v1457 = vld [vmem:[%s17 + $0xd0] sm:$0xff]
    %v1458 = vld [vmem:[%s17 + $0xd8] sm:$0xff]
    %v1459 = vld [vmem:[%s17 + $0xe0] sm:$0xff]
    %v1460 = vld [vmem:[%s17 + $0xe8] sm:$0xff]
    %v1461 = vld [vmem:[%s17 + $0xf0] sm:$0xff]
    %v1462 = vld [vmem:[%s17 + $0xf8] sm:$0xff]
    %v1463 = vld [vmem:[%s17 + $0x100] sm:$0xff]
    %v1464 = vld [vmem:[%s17 + $0x108] sm:$0xff]
    %v1465 = vld [vmem:[%s17 + $0x110] sm:$0xff]
    %v1466 = vld [vmem:[%s17 + $0x118] sm:$0xff]
    %v1467 = vld [vmem:[%s17 + $0x120] sm:$0xff]
    %v1468 = vld [vmem:[%s17 + $0x128] sm:$0xff]
    %v1469 = vld [vmem:[%s17 + $0x130] sm:$0xff]
    %v1470 = vld [vmem:[%s17 + $0x138] sm:$0xff]
    %v1471 = vld [vmem:[%s17 + $0x140] sm:$0xff]
    %v1472 = vld [vmem:[%s17 + $0x148] sm:$0xff]
    %v1473 = vld [vmem:[%s17 + $0x150] sm:$0xff]
    %v1474 = vld [vmem:[%s17 + $0x158] sm:$0xff]
    %v1475 = vld [vmem:[%s17 + $0x160] sm:$0xff]
    %v1476 = vld [vmem:[%s17 + $0x168] sm:$0xff]
    %v1477 = vld [vmem:[%s17 + $0x170] sm:$0xff]
    %v1478 = vld [vmem:[%s17 + $0x178] sm:$0xff]
    %v1479 = vld [vmem:[%s17 + $0x180] sm:$0xff]
    %v1480 = vld [vmem:[%s17 + $0x188] sm:$0xff]
    %v1481 = vld [vmem:[%s17 + $0x190] sm:$0xff]
    %v1482 = vld [vmem:[%s17 + $0x198] sm:$0xff]
    %v1483 = vld [vmem:[%s17 + $0x1a0] sm:$0xff]
    %v1484 = vld [vmem:[%s17 + $0x1a8] sm:$0xff]
    %v1485 = vld [vmem:[%s17 + $0x1b0] sm:$0xff]
    %v1486 = vld [vmem:[%s17 + $0x1b8] sm:$0xff]
    %v1487 = vld [vmem:[%s17 + $0x1c0] sm:$0xff]
    %v1488 = vld [vmem:[%s17 + $0x1c8] sm:$0xff]
    %v1489 = vld [vmem:[%s17 + $0x1d0] sm:$0xff]
    %v1490 = vld [vmem:[%s17 + $0x1d8] sm:$0xff]
    %v1491 = vld [vmem:[%s17 + $0x1e0] sm:$0xff]
    %v1492 = vld [vmem:[%s17 + $0x1e8] sm:$0xff]
    %v1493 = vld [vmem:[%s17 + $0x1f0] sm:$0xff]
    %v1494 = vld [vmem:[%s17 + $0x1f8] sm:$0xff]
    %v1495 = vld [vmem:[%s17 + $0x200] sm:$0xff]
    %v1496 = vld [vmem:[%s17 + $0x208] sm:$0xff]
    %v1497 = vld [vmem:[%s17 + $0x210] sm:$0xff]
    %v1498 = vld [vmem:[%s17 + $0x218] sm:$0xff]
    %v1499 = vld [vmem:[%s17 + $0x220] sm:$0xff]
    %v1500 = vld [vmem:[%s17 + $0x228] sm:$0xff]
    %v1501 = vld [vmem:[%s17 + $0x230] sm:$0xff]
    %v1502 = vld [vmem:[%s17 + $0x238] sm:$0xff]
    %v1503 = vld [vmem:[%s17 + $0x240] sm:$0xff]
    %v1504 = vld [vmem:[%s17 + $0x248] sm:$0xff]
    %v1505 = vld [vmem:[%s17 + $0x250] sm:$0xff]
    %v1506 = vld [vmem:[%s17 + $0x258] sm:$0xff]
    %v1507 = vld [vmem:[%s17 + $0x260] sm:$0xff]
    %v1508 = vld [vmem:[%s17 + $0x268] sm:$0xff]
    %v1509 = vld [vmem:[%s17 + $0x270] sm:$0xff]
    %v1510 = vld [vmem:[%s17 + $0x278] sm:$0xff]
    %v1511 = vld [vmem:[%s1 + $0x19] sm:$0x3]
    %v1512 = vpack.c.bf16 %v1426, %v1426
    %v1513 = vpack.c.bf16 %v1427, %v1427
    %v1514 = vpack.c.bf16 %v1428, %v1428
    %v1515 = vpack.c.bf16 %v1429, %v1429
    %v1516 = vpack.c.bf16 %v1430, %v1430
    %v1518 = vperm.slane %v1511, 0
    %v1519 = vperm.slane %v1511, 1
    %v1602 = vunpack.c.l.b16 %v1431
    %v1603 = vunpack.c.h.b16 %v1431
    %v1604 = vunpack.c.l.b16 %v1432
    %v1605 = vunpack.c.h.b16 %v1432
    %v1606 = vunpack.c.l.b16 %v1433
    %v1607 = vunpack.c.h.b16 %v1433
    %v1608 = vunpack.c.l.b16 %v1434
    %v1609 = vunpack.c.h.b16 %v1434
    %v1610 = vunpack.c.l.b16 %v1435
    %v1611 = vunpack.c.h.b16 %v1435
    %v1612 = vunpack.c.l.b16 %v1436
    %v1613 = vunpack.c.h.b16 %v1436
    %v1614 = vunpack.c.l.b16 %v1437
    %v1615 = vunpack.c.h.b16 %v1437
    %v1616 = vunpack.c.l.b16 %v1438
    %v1617 = vunpack.c.h.b16 %v1438
    %v1618 = vunpack.c.l.b16 %v1439
    %v1619 = vunpack.c.h.b16 %v1439
    %v1620 = vunpack.c.l.b16 %v1440
    %v1621 = vunpack.c.h.b16 %v1440
    %v1622 = vunpack.c.l.b16 %v1441
    %v1623 = vunpack.c.h.b16 %v1441
    %v1624 = vunpack.c.l.b16 %v1442
    %v1625 = vunpack.c.h.b16 %v1442
    %v1626 = vunpack.c.l.b16 %v1443
    %v1627 = vunpack.c.h.b16 %v1443
    %v1628 = vunpack.c.l.b16 %v1444
    %v1629 = vunpack.c.h.b16 %v1444
    %v1630 = vunpack.c.l.b16 %v1445
    %v1631 = vunpack.c.h.b16 %v1445
    %v1632 = vunpack.c.l.b16 %v1446
    %v1633 = vunpack.c.h.b16 %v1446
    %v1634 = vunpack.c.l.b16 %v1447
    %v1635 = vunpack.c.h.b16 %v1447
    %v1636 = vunpack.c.l.b16 %v1448
    %v1637 = vunpack.c.h.b16 %v1448
    %v1638 = vunpack.c.l.b16 %v1449
    %v1639 = vunpack.c.h.b16 %v1449
    %v1640 = vunpack.c.l.b16 %v1450
    %v1641 = vunpack.c.h.b16 %v1450
    %v1642 = vunpack.c.l.b16 %v1451
    %v1643 = vunpack.c.h.b16 %v1451
    %v1644 = vunpack.c.l.b16 %v1452
    %v1645 = vunpack.c.h.b16 %v1452
    %v1646 = vunpack.c.l.b16 %v1453
    %v1647 = vunpack.c.h.b16 %v1453
    %v1648 = vunpack.c.l.b16 %v1454
    %v1649 = vunpack.c.h.b16 %v1454
    %v1650 = vunpack.c.l.b16 %v1455
    %v1651 = vunpack.c.h.b16 %v1455
    %v1652 = vunpack.c.l.b16 %v1456
    %v1653 = vunpack.c.h.b16 %v1456
    %v1654 = vunpack.c.l.b16 %v1457
    %v1655 = vunpack.c.h.b16 %v1457
    %v1656 = vunpack.c.l.b16 %v1458
    %v1657 = vunpack.c.h.b16 %v1458
    %v1658 = vunpack.c.l.b16 %v1459
    %v1659 = vunpack.c.h.b16 %v1459
    %v1660 = vunpack.c.l.b16 %v1460
    %v1661 = vunpack.c.h.b16 %v1460
    %v1662 = vunpack.c.l.b16 %v1461
    %v1663 = vunpack.c.h.b16 %v1461
    %v1664 = vunpack.c.l.b16 %v1462
    %v1665 = vunpack.c.h.b16 %v1462
    %v1666 = vunpack.c.l.b16 %v1463
    %v1667 = vunpack.c.h.b16 %v1463
    %v1668 = vunpack.c.l.b16 %v1464
    %v1669 = vunpack.c.h.b16 %v1464
    %v1670 = vunpack.c.l.b16 %v1465
    %v1671 = vunpack.c.h.b16 %v1465
    %v1672 = vunpack.c.l.b16 %v1466
    %v1673 = vunpack.c.h.b16 %v1466
    %v1674 = vunpack.c.l.b16 %v1467
    %v1675 = vunpack.c.h.b16 %v1467
    %v1676 = vunpack.c.l.b16 %v1468
    %v1677 = vunpack.c.h.b16 %v1468
    %v1678 = vunpack.c.l.b16 %v1469
    %v1679 = vunpack.c.h.b16 %v1469
    %v1680 = vunpack.c.l.b16 %v1470
    %v1681 = vunpack.c.h.b16 %v1470
    %v1682 = vunpack.c.l.b16 %v1471
    %v1683 = vunpack.c.h.b16 %v1471
    %v1684 = vunpack.c.l.b16 %v1472
    %v1685 = vunpack.c.h.b16 %v1472
    %v1686 = vunpack.c.l.b16 %v1473
    %v1687 = vunpack.c.h.b16 %v1473
    %v1688 = vunpack.c.l.b16 %v1474
    %v1689 = vunpack.c.h.b16 %v1474
    %v1690 = vunpack.c.l.b16 %v1475
    %v1691 = vunpack.c.h.b16 %v1475
    %v1692 = vunpack.c.l.b16 %v1476
    %v1693 = vunpack.c.h.b16 %v1476
    %v1694 = vunpack.c.l.b16 %v1477
    %v1695 = vunpack.c.h.b16 %v1477
    %v1696 = vunpack.c.l.b16 %v1478
    %v1697 = vunpack.c.h.b16 %v1478
    %v1698 = vunpack.c.l.b16 %v1479
    %v1699 = vunpack.c.h.b16 %v1479
    %v1700 = vunpack.c.l.b16 %v1480
    %v1701 = vunpack.c.h.b16 %v1480
    %v1702 = vunpack.c.l.b16 %v1481
    %v1703 = vunpack.c.h.b16 %v1481
    %v1704 = vunpack.c.l.b16 %v1482
    %v1705 = vunpack.c.h.b16 %v1482
    %v1706 = vunpack.c.l.b16 %v1483
    %v1707 = vunpack.c.h.b16 %v1483
    %v1708 = vunpack.c.l.b16 %v1484
    %v1709 = vunpack.c.h.b16 %v1484
    %v1710 = vunpack.c.l.b16 %v1485
    %v1711 = vunpack.c.h.b16 %v1485
    %v1712 = vunpack.c.l.b16 %v1486
    %v1713 = vunpack.c.h.b16 %v1486
    %v1714 = vunpack.c.l.b16 %v1487
    %v1715 = vunpack.c.h.b16 %v1487
    %v1716 = vunpack.c.l.b16 %v1488
    %v1717 = vunpack.c.h.b16 %v1488
    %v1718 = vunpack.c.l.b16 %v1489
    %v1719 = vunpack.c.h.b16 %v1489
    %v1720 = vunpack.c.l.b16 %v1490
    %v1721 = vunpack.c.h.b16 %v1490
    %v1722 = vunpack.c.l.b16 %v1491
    %v1723 = vunpack.c.h.b16 %v1491
    %v1724 = vunpack.c.l.b16 %v1492
    %v1725 = vunpack.c.h.b16 %v1492
    %v1726 = vunpack.c.l.b16 %v1493
    %v1727 = vunpack.c.h.b16 %v1493
    %v1728 = vunpack.c.l.b16 %v1494
    %v1729 = vunpack.c.h.b16 %v1494
    %v1730 = vunpack.c.l.b16 %v1495
    %v1731 = vunpack.c.h.b16 %v1495
    %v1732 = vunpack.c.l.b16 %v1496
    %v1733 = vunpack.c.h.b16 %v1496
    %v1734 = vunpack.c.l.b16 %v1497
    %v1735 = vunpack.c.h.b16 %v1497
    %v1736 = vunpack.c.l.b16 %v1498
    %v1737 = vunpack.c.h.b16 %v1498
    %v1738 = vunpack.c.l.b16 %v1499
    %v1739 = vunpack.c.h.b16 %v1499
    %v1740 = vunpack.c.l.b16 %v1500
    %v1741 = vunpack.c.h.b16 %v1500
    %v1742 = vunpack.c.l.b16 %v1501
    %v1743 = vunpack.c.h.b16 %v1501
    %v1744 = vunpack.c.l.b16 %v1502
    %v1745 = vunpack.c.h.b16 %v1502
    %v1746 = vunpack.c.l.b16 %v1503
    %v1747 = vunpack.c.h.b16 %v1503
    %v1748 = vunpack.c.l.b16 %v1504
    %v1749 = vunpack.c.h.b16 %v1504
    %v1750 = vunpack.c.l.b16 %v1505
    %v1751 = vunpack.c.h.b16 %v1505
    %v1752 = vunpack.c.l.b16 %v1506
    %v1753 = vunpack.c.h.b16 %v1506
    %v1754 = vunpack.c.l.b16 %v1507
    %v1755 = vunpack.c.h.b16 %v1507
    %v1756 = vunpack.c.l.b16 %v1508
    %v1757 = vunpack.c.h.b16 %v1508
    %v1758 = vunpack.c.l.b16 %v1509
    %v1759 = vunpack.c.h.b16 %v1509
    %v1760 = vunpack.c.l.b16 %v1510
    %v1761 = vunpack.c.h.b16 %v1510
    %v1762 = vpack.c.b16 %v1604, %v1602
    %v1763 = vpack.c.b16 %v1605, %v1603
    %v1764 = vpack.c.b16 %v1608, %v1606
    %v1765 = vpack.c.b16 %v1609, %v1607
    %v1766 = vpack.c.b16 %v1612, %v1610
    %v1767 = vpack.c.b16 %v1613, %v1611
    %v1768 = vpack.c.b16 %v1616, %v1614
    %v1769 = vpack.c.b16 %v1617, %v1615
    %v1770 = vpack.c.b16 %v1620, %v1618
    %v1771 = vpack.c.b16 %v1621, %v1619
    %v1772 = vpack.c.b16 %v1624, %v1622
    %v1773 = vpack.c.b16 %v1625, %v1623
    %v1774 = vpack.c.b16 %v1628, %v1626
    %v1775 = vpack.c.b16 %v1629, %v1627
    %v1776 = vpack.c.b16 %v1632, %v1630
    %v1777 = vpack.c.b16 %v1633, %v1631
    %v1778 = vpack.c.b16 %v1636, %v1634
    %v1779 = vpack.c.b16 %v1637, %v1635
    %v1780 = vpack.c.b16 %v1640, %v1638
    %v1781 = vpack.c.b16 %v1641, %v1639
    %v1782 = vpack.c.b16 %v1644, %v1642
    %v1783 = vpack.c.b16 %v1645, %v1643
    %v1784 = vpack.c.b16 %v1648, %v1646
    %v1785 = vpack.c.b16 %v1649, %v1647
    %v1786 = vpack.c.b16 %v1652, %v1650
    %v1787 = vpack.c.b16 %v1653, %v1651
    %v1788 = vpack.c.b16 %v1656, %v1654
    %v1789 = vpack.c.b16 %v1657, %v1655
    %v1790 = vpack.c.b16 %v1660, %v1658
    %v1791 = vpack.c.b16 %v1661, %v1659
    %v1792 = vpack.c.b16 %v1664, %v1662
    %v1793 = vpack.c.b16 %v1665, %v1663
    %v1794 = vpack.c.b16 %v1668, %v1666
    %v1795 = vpack.c.b16 %v1669, %v1667
    %v1796 = vpack.c.b16 %v1672, %v1670
    %v1797 = vpack.c.b16 %v1673, %v1671
    %v1798 = vpack.c.b16 %v1676, %v1674
    %v1799 = vpack.c.b16 %v1677, %v1675
    %v1800 = vpack.c.b16 %v1680, %v1678
    %v1801 = vpack.c.b16 %v1681, %v1679
    %v1802 = vpack.c.b16 %v1684, %v1682
    %v1803 = vpack.c.b16 %v1685, %v1683
    %v1804 = vpack.c.b16 %v1688, %v1686
    %v1805 = vpack.c.b16 %v1689, %v1687
    %v1806 = vpack.c.b16 %v1692, %v1690
    %v1807 = vpack.c.b16 %v1693, %v1691
    %v1808 = vpack.c.b16 %v1696, %v1694
    %v1809 = vpack.c.b16 %v1697, %v1695
    %v1810 = vpack.c.b16 %v1700, %v1698
    %v1811 = vpack.c.b16 %v1701, %v1699
    %v1812 = vpack.c.b16 %v1704, %v1702
    %v1813 = vpack.c.b16 %v1705, %v1703
    %v1814 = vpack.c.b16 %v1708, %v1706
    %v1815 = vpack.c.b16 %v1709, %v1707
    %v1816 = vpack.c.b16 %v1712, %v1710
    %v1817 = vpack.c.b16 %v1713, %v1711
    %v1818 = vpack.c.b16 %v1716, %v1714
    %v1819 = vpack.c.b16 %v1717, %v1715
    %v1820 = vpack.c.b16 %v1720, %v1718
    %v1821 = vpack.c.b16 %v1721, %v1719
    %v1822 = vpack.c.b16 %v1724, %v1722
    %v1823 = vpack.c.b16 %v1725, %v1723
    %v1824 = vpack.c.b16 %v1728, %v1726
    %v1825 = vpack.c.b16 %v1729, %v1727
    %v1826 = vpack.c.b16 %v1732, %v1730
    %v1827 = vpack.c.b16 %v1733, %v1731
    %v1828 = vpack.c.b16 %v1736, %v1734
    %v1829 = vpack.c.b16 %v1737, %v1735
    %v1830 = vpack.c.b16 %v1740, %v1738
    %v1831 = vpack.c.b16 %v1741, %v1739
    %v1832 = vpack.c.b16 %v1744, %v1742
    %v1833 = vpack.c.b16 %v1745, %v1743
    %v1834 = vpack.c.b16 %v1748, %v1746
    %v1835 = vpack.c.b16 %v1749, %v1747
    %v1836 = vpack.c.b16 %v1752, %v1750
    %v1837 = vpack.c.b16 %v1753, %v1751
    %v1838 = vpack.c.b16 %v1756, %v1754
    %v1839 = vpack.c.b16 %v1757, %v1755
    %v1840 = vpack.c.b16 %v1760, %v1758
    %v1841 = vpack.c.b16 %v1761, %v1759
    %1922 = vmatpush.bf16.msra.mxu0 %v1776
    %1923 = vmatpush.bf16.msra.mxu0 %v1774
    %1924 = vmatpush.bf16.msra.mxu0 %v1772
    %1925 = vmatpush.bf16.msra.mxu0 %v1770
    %1926 = vmatpush.bf16.msra.mxu0 %v1768
    %1927 = vmatpush.bf16.msra.mxu0 %v1766
    %1928 = vmatpush.bf16.msra.mxu0 %v1764
    %1929 = vmatpush.bf16.msra.mxu0 %v1762
    %1930 = vmatmul.bf16.gmra.mxu0 %v1512
    %v1931 = vpop.f32.mrf.mxu0
    %v1932 = vadd.f32 %v1518, %v1931
    %v1933 = vpop.f32.mrf.mxu0
    %1934 = vdwg.mxu0
    %1935 = vmatpush.bf16.msra.mxu0 %v1792
    %1936 = vmatpush.bf16.msra.mxu0 %v1790
    %1937 = vmatpush.bf16.msra.mxu0 %v1788
    %1938 = vmatpush.bf16.msra.mxu0 %v1786
    %1939 = vmatpush.bf16.msra.mxu0 %v1784
    %1940 = vmatpush.bf16.msra.mxu0 %v1782
    %1941 = vmatpush.bf16.msra.mxu0 %v1780
    %1942 = vmatpush.bf16.msra.mxu0 %v1778
    %1943 = vmatmul.bf16.gmra.mxu0 %v1513
    %v1944 = vpop.f32.mrf.mxu0
    %v1945 = vadd.f32 %v1932, %v1944
    %v1946 = vpop.f32.mrf.mxu0
    %1947 = vdwg.mxu0
    %1948 = vmatpush.bf16.msra.mxu0 %v1808
    %1949 = vmatpush.bf16.msra.mxu0 %v1806
    %1950 = vmatpush.bf16.msra.mxu0 %v1804
    %1951 = vmatpush.bf16.msra.mxu0 %v1802
    %1952 = vmatpush.bf16.msra.mxu0 %v1800
    %1953 = vmatpush.bf16.msra.mxu0 %v1798
    %1954 = vmatpush.bf16.msra.mxu0 %v1796
    %1955 = vmatpush.bf16.msra.mxu0 %v1794
    %1956 = vmatmul.bf16.gmra.mxu0 %v1514
    %v1957 = vpop.f32.mrf.mxu0
    %v1958 = vadd.f32 %v1945, %v1957
    %v1959 = vpop.f32.mrf.mxu0
    %1960 = vdwg.mxu0
    %1961 = vmatpush.bf16.msra.mxu0 %v1824
    %1962 = vmatpush.bf16.msra.mxu0 %v1822
    %1963 = vmatpush.bf16.msra.mxu0 %v1820
    %1964 = vmatpush.bf16.msra.mxu0 %v1818
    %1965 = vmatpush.bf16.msra.mxu0 %v1816
    %1966 = vmatpush.bf16.msra.mxu0 %v1814
    %1967 = vmatpush.bf16.msra.mxu0 %v1812
    %1968 = vmatpush.bf16.msra.mxu0 %v1810
    %1969 = vmatmul.bf16.gmra.mxu0 %v1515
    %v1970 = vpop.f32.mrf.mxu0
    %v1971 = vadd.f32 %v1958, %v1970
    %v1972 = vpop.f32.mrf.mxu0
    %1973 = vdwg.mxu0
    %1974 = vmatpush.bf16.msra.mxu0 %v1840
    %1975 = vmatpush.bf16.msra.mxu0 %v1838
    %1976 = vmatpush.bf16.msra.mxu0 %v1836
    %1977 = vmatpush.bf16.msra.mxu0 %v1834
    %1978 = vmatpush.bf16.msra.mxu0 %v1832
    %1979 = vmatpush.bf16.msra.mxu0 %v1830
    %1980 = vmatpush.bf16.msra.mxu0 %v1828
    %1981 = vmatpush.bf16.msra.mxu0 %v1826
    %1982 = vmatmul.bf16.gmra.mxu0 %v1516
    %v1983 = vpop.f32.mrf.mxu0
    %v1984 = vadd.f32 %v1971, %v1983
    %v1985 = vpop.f32.mrf.mxu0
    %1986 = vdwg.mxu0
    %1987 = vmatpush.bf16.msra.mxu0 %v1777
    %1988 = vmatpush.bf16.msra.mxu0 %v1775
    %1989 = vmatpush.bf16.msra.mxu0 %v1773
    %1990 = vmatpush.bf16.msra.mxu0 %v1771
    %1991 = vmatpush.bf16.msra.mxu0 %v1769
    %1992 = vmatpush.bf16.msra.mxu0 %v1767
    %1993 = vmatpush.bf16.msra.mxu0 %v1765
    %1994 = vmatpush.bf16.msra.mxu0 %v1763
    %1995 = vmatmul.bf16.gmra.mxu0 %v1512
    %v1996 = vpop.f32.mrf.mxu0
    %v1997 = vadd.f32 %v1519, %v1996
    %v1998 = vpop.f32.mrf.mxu0
    %1999 = vdwg.mxu0
    %2000 = vmatpush.bf16.msra.mxu0 %v1793
    %2001 = vmatpush.bf16.msra.mxu0 %v1791
    %2002 = vmatpush.bf16.msra.mxu0 %v1789
    %2003 = vmatpush.bf16.msra.mxu0 %v1787
    %2004 = vmatpush.bf16.msra.mxu0 %v1785
    %2005 = vmatpush.bf16.msra.mxu0 %v1783
    %2006 = vmatpush.bf16.msra.mxu0 %v1781
    %2007 = vmatpush.bf16.msra.mxu0 %v1779
    %2008 = vmatmul.bf16.gmra.mxu0 %v1513
    %v2009 = vpop.f32.mrf.mxu0
    %v2010 = vadd.f32 %v1997, %v2009
    %v2011 = vpop.f32.mrf.mxu0
    %2012 = vdwg.mxu0
    %2013 = vmatpush.bf16.msra.mxu0 %v1809
    %2014 = vmatpush.bf16.msra.mxu0 %v1807
    %2015 = vmatpush.bf16.msra.mxu0 %v1805
    %2016 = vmatpush.bf16.msra.mxu0 %v1803
    %2017 = vmatpush.bf16.msra.mxu0 %v1801
    %2018 = vmatpush.bf16.msra.mxu0 %v1799
    %2019 = vmatpush.bf16.msra.mxu0 %v1797
    %2020 = vmatpush.bf16.msra.mxu0 %v1795
    %2021 = vmatmul.bf16.gmra.mxu0 %v1514
    %v2022 = vpop.f32.mrf.mxu0
    %v2023 = vadd.f32 %v2010, %v2022
    %v2024 = vpop.f32.mrf.mxu0
    %2025 = vdwg.mxu0
    %2026 = vmatpush.bf16.msra.mxu0 %v1825
    %2027 = vmatpush.bf16.msra.mxu0 %v1823
    %2028 = vmatpush.bf16.msra.mxu0 %v1821
    %2029 = vmatpush.bf16.msra.mxu0 %v1819
    %2030 = vmatpush.bf16.msra.mxu0 %v1817
    %2031 = vmatpush.bf16.msra.mxu0 %v1815
    %2032 = vmatpush.bf16.msra.mxu0 %v1813
    %2033 = vmatpush.bf16.msra.mxu0 %v1811
    %2034 = vmatmul.bf16.gmra.mxu0 %v1515
    %v2035 = vpop.f32.mrf.mxu0
    %v2036 = vadd.f32 %v2023, %v2035
    %v2037 = vpop.f32.mrf.mxu0
    %2038 = vdwg.mxu0
    %2039 = vmatpush.bf16.msra.mxu0 %v1841
    %2040 = vmatpush.bf16.msra.mxu0 %v1839
    %2041 = vmatpush.bf16.msra.mxu0 %v1837
    %2042 = vmatpush.bf16.msra.mxu0 %v1835
    %2043 = vmatpush.bf16.msra.mxu0 %v1833
    %2044 = vmatpush.bf16.msra.mxu0 %v1831
    %2045 = vmatpush.bf16.msra.mxu0 %v1829
    %2046 = vmatpush.bf16.msra.mxu0 %v1827
    %2047 = vmatmul.bf16.gmra.mxu0 %v1516
    %v2048 = vpop.f32.mrf.mxu0
    %v2049 = vadd.f32 %v2036, %v2048
    %v2050 = vpop.f32.mrf.mxu0
    %2051 = vdwg.mxu0
    %vm2052 = vcmp.ge.f32.partialorder %v1984, 0.0
    %vm2053 = vcmp.ge.f32.partialorder %v2049, 0.0
    %v2054 = vmul.f32 %v1984, 0.01
    %v2055 = vmul.f32 %v2049, 0.01
    %v2056 = vsel %vm2052, %v1984, %v2054
    %v2057 = vsel %vm2053, %v2049, %v2055
    %v2058 = vld [vmem:[%s18] sm:$0xff]
    %v2059 = vld [vmem:[%s18 + $0x8] sm:$0xf]
    %v2060 = vld [vmem:[%s18 + $0xc] sm:$0xff]
    %v2061 = vld [vmem:[%s18 + $0x14] sm:$0xf]
    %v2062 = vld [vmem:[%s18 + $0x18] sm:$0xff]
    %v2063 = vld [vmem:[%s18 + $0x20] sm:$0xf]
    %v2064 = vld [vmem:[%s18 + $0x24] sm:$0xff]
    %v2065 = vld [vmem:[%s18 + $0x2c] sm:$0xf]
    %v2066 = vld [vmem:[%s18 + $0x30] sm:$0xff]
    %v2067 = vld [vmem:[%s18 + $0x38] sm:$0xf]
    %v2068 = vld [vmem:[%s18 + $0x3c] sm:$0xff]
    %v2069 = vld [vmem:[%s18 + $0x44] sm:$0xf]
    %v2070 = vld [vmem:[%s18 + $0x48] sm:$0xff]
    %v2071 = vld [vmem:[%s18 + $0x50] sm:$0xf]
    %v2072 = vld [vmem:[%s18 + $0x54] sm:$0xff]
    %v2073 = vld [vmem:[%s18 + $0x5c] sm:$0xf]
    %v2074 = vld [vmem:[%s18 + $0x60] sm:$0xff]
    %v2075 = vld [vmem:[%s18 + $0x68] sm:$0xf]
    %v2076 = vld [vmem:[%s18 + $0x6c] sm:$0xff]
    %v2077 = vld [vmem:[%s18 + $0x74] sm:$0xf]
    %v2078 = vld [vmem:[%s18 + $0x78] sm:$0xff]
    %v2079 = vld [vmem:[%s18 + $0x80] sm:$0xf]
    %v2080 = vld [vmem:[%s18 + $0x84] sm:$0xff]
    %v2081 = vld [vmem:[%s18 + $0x8c] sm:$0xf]
    %v2082 = vld [vmem:[%s18 + $0x90] sm:$0xff]
    %v2083 = vld [vmem:[%s18 + $0x98] sm:$0xf]
    %v2084 = vld [vmem:[%s18 + $0x9c] sm:$0xff]
    %v2085 = vld [vmem:[%s18 + $0xa4] sm:$0xf]
    %v2086 = vld [vmem:[%s18 + $0xa8] sm:$0xff]
    %v2087 = vld [vmem:[%s18 + $0xb0] sm:$0xf]
    %v2088 = vld [vmem:[%s18 + $0xb4] sm:$0xff]
    %v2089 = vld [vmem:[%s18 + $0xbc] sm:$0xf]
    %v2090 = vld [vmem:[%s18 + $0xc0] sm:$0xff]
    %v2091 = vld [vmem:[%s18 + $0xc8] sm:$0xf]
    %v2092 = vld [vmem:[%s18 + $0xcc] sm:$0xff]
    %v2093 = vld [vmem:[%s18 + $0xd4] sm:$0xf]
    %v2094 = vld [vmem:[%s18 + $0xd8] sm:$0xff]
    %v2095 = vld [vmem:[%s18 + $0xe0] sm:$0xf]
    %v2096 = vld [vmem:[%s18 + $0xe4] sm:$0xff]
    %v2097 = vld [vmem:[%s18 + $0xec] sm:$0xf]
    %v2098 = vld [vmem:[%s1 + $0x1b] sm:$0x7]
    %v2099 = vpack.c.bf16 %v2056, %v2056
    %v2100 = vpack.c.bf16 %v2057, %v2057
    %v2102 = vperm.slane %v2098, 0
    %v2103 = vperm.slane %v2098, 1
    %v2104 = vperm.slane %v2098, 2
    %v2148 = vunpack.c.l.b16 %v2058
    %v2149 = vunpack.c.h.b16 %v2058
    %v2150 = vunpack.c.l.b16 %v2059
    %v2151 = vunpack.c.l.b16 %v2060
    %v2152 = vunpack.c.h.b16 %v2060
    %v2153 = vunpack.c.l.b16 %v2061
    %v2154 = vunpack.c.l.b16 %v2062
    %v2155 = vunpack.c.h.b16 %v2062
    %v2156 = vunpack.c.l.b16 %v2063
    %v2157 = vunpack.c.l.b16 %v2064
    %v2158 = vunpack.c.h.b16 %v2064
    %v2159 = vunpack.c.l.b16 %v2065
    %v2160 = vunpack.c.l.b16 %v2066
    %v2161 = vunpack.c.h.b16 %v2066
    %v2162 = vunpack.c.l.b16 %v2067
    %v2163 = vunpack.c.l.b16 %v2068
    %v2164 = vunpack.c.h.b16 %v2068
    %v2165 = vunpack.c.l.b16 %v2069
    %v2166 = vunpack.c.l.b16 %v2070
    %v2167 = vunpack.c.h.b16 %v2070
    %v2168 = vunpack.c.l.b16 %v2071
    %v2169 = vunpack.c.l.b16 %v2072
    %v2170 = vunpack.c.h.b16 %v2072
    %v2171 = vunpack.c.l.b16 %v2073
    %v2172 = vunpack.c.l.b16 %v2074
    %v2173 = vunpack.c.h.b16 %v2074
    %v2174 = vunpack.c.l.b16 %v2075
    %v2175 = vunpack.c.l.b16 %v2076
    %v2176 = vunpack.c.h.b16 %v2076
    %v2177 = vunpack.c.l.b16 %v2077
    %v2178 = vunpack.c.l.b16 %v2078
    %v2179 = vunpack.c.h.b16 %v2078
    %v2180 = vunpack.c.l.b16 %v2079
    %v2181 = vunpack.c.l.b16 %v2080
    %v2182 = vunpack.c.h.b16 %v2080
    %v2183 = vunpack.c.l.b16 %v2081
    %v2184 = vunpack.c.l.b16 %v2082
    %v2185 = vunpack.c.h.b16 %v2082
    %v2186 = vunpack.c.l.b16 %v2083
    %v2187 = vunpack.c.l.b16 %v2084
    %v2188 = vunpack.c.h.b16 %v2084
    %v2189 = vunpack.c.l.b16 %v2085
    %v2190 = vunpack.c.l.b16 %v2086
    %v2191 = vunpack.c.h.b16 %v2086
    %v2192 = vunpack.c.l.b16 %v2087
    %v2193 = vunpack.c.l.b16 %v2088
    %v2194 = vunpack.c.h.b16 %v2088
    %v2195 = vunpack.c.l.b16 %v2089
    %v2196 = vunpack.c.l.b16 %v2090
    %v2197 = vunpack.c.h.b16 %v2090
    %v2198 = vunpack.c.l.b16 %v2091
    %v2199 = vunpack.c.l.b16 %v2092
    %v2200 = vunpack.c.h.b16 %v2092
    %v2201 = vunpack.c.l.b16 %v2093
    %v2202 = vunpack.c.l.b16 %v2094
    %v2203 = vunpack.c.h.b16 %v2094
    %v2204 = vunpack.c.l.b16 %v2095
    %v2205 = vunpack.c.l.b16 %v2096
    %v2206 = vunpack.c.h.b16 %v2096
    %v2207 = vunpack.c.l.b16 %v2097
    %v2208 = vpack.c.b16 %v2151, %v2148
    %v2209 = vpack.c.b16 %v2152, %v2149
    %v2210 = vpack.c.b16 %v2153, %v2150
    %v2211 = vpack.c.b16 %v2157, %v2154
    %v2212 = vpack.c.b16 %v2158, %v2155
    %v2213 = vpack.c.b16 %v2159, %v2156
    %v2214 = vpack.c.b16 %v2163, %v2160
    %v2215 = vpack.c.b16 %v2164, %v2161
    %v2216 = vpack.c.b16 %v2165, %v2162
    %v2217 = vpack.c.b16 %v2169, %v2166
    %v2218 = vpack.c.b16 %v2170, %v2167
    %v2219 = vpack.c.b16 %v2171, %v2168
    %v2220 = vpack.c.b16 %v2175, %v2172
    %v2221 = vpack.c.b16 %v2176, %v2173
    %v2222 = vpack.c.b16 %v2177, %v2174
    %v2223 = vpack.c.b16 %v2181, %v2178
    %v2224 = vpack.c.b16 %v2182, %v2179
    %v2225 = vpack.c.b16 %v2183, %v2180
    %v2226 = vpack.c.b16 %v2187, %v2184
    %v2227 = vpack.c.b16 %v2188, %v2185
    %v2228 = vpack.c.b16 %v2189, %v2186
    %v2229 = vpack.c.b16 %v2193, %v2190
    %v2230 = vpack.c.b16 %v2194, %v2191
    %v2231 = vpack.c.b16 %v2195, %v2192
    %v2232 = vpack.c.b16 %v2199, %v2196
    %v2233 = vpack.c.b16 %v2200, %v2197
    %v2234 = vpack.c.b16 %v2201, %v2198
    %v2235 = vpack.c.b16 %v2205, %v2202
    %v2236 = vpack.c.b16 %v2206, %v2203
    %v2237 = vpack.c.b16 %v2207, %v2204
    %v2269 = vsel %vm213, %v2100, 0
    %2271 = vmatpush.bf16.msra.mxu0 %v2229
    %2272 = vmatpush.bf16.msra.mxu0 %v2226
    %2273 = vmatpush.bf16.msra.mxu0 %v2223
    %2274 = vmatpush.bf16.msra.mxu0 %v2220
    %2275 = vmatpush.bf16.msra.mxu0 %v2217
    %2276 = vmatpush.bf16.msra.mxu0 %v2214
    %2277 = vmatpush.bf16.msra.mxu0 %v2211
    %2278 = vmatpush.bf16.msra.mxu0 %v2208
    %2279 = vmatmul.bf16.gmra.mxu0 %v2099
    %v2280 = vpop.f32.mrf.mxu0
    %v2281 = vadd.f32 %v2102, %v2280
    %v2282 = vpop.f32.mrf.mxu0
    %2283 = vdwg.mxu0
    %2284 = vmatpush.bf16.msra.mxu0 0
    %2285 = vmatpush.bf16.msra.mxu0 0
    %2286 = vmatpush.bf16.msra.mxu0 0
    %2287 = vmatpush.bf16.msra.mxu0 0
    %2288 = vmatpush.bf16.msra.mxu0 0
    %2289 = vmatpush.bf16.msra.mxu0 0
    %2290 = vmatpush.bf16.msra.mxu0 %v2235
    %2291 = vmatpush.bf16.msra.mxu0 %v2232
    %2292 = vmatmul.bf16.gmra.mxu0 %v2269
    %v2293 = vpop.f32.mrf.mxu0
    %v2294 = vadd.f32 %v2281, %v2293
    %v2295 = vpop.f32.mrf.mxu0
    %2296 = vdwg.mxu0
    %2297 = vmatpush.bf16.msra.mxu0 %v2230
    %2298 = vmatpush.bf16.msra.mxu0 %v2227
    %2299 = vmatpush.bf16.msra.mxu0 %v2224
    %2300 = vmatpush.bf16.msra.mxu0 %v2221
    %2301 = vmatpush.bf16.msra.mxu0 %v2218
    %2302 = vmatpush.bf16.msra.mxu0 %v2215
    %2303 = vmatpush.bf16.msra.mxu0 %v2212
    %2304 = vmatpush.bf16.msra.mxu0 %v2209
    %2305 = vmatmul.bf16.gmra.mxu0 %v2099
    %v2306 = vpop.f32.mrf.mxu0
    %v2307 = vadd.f32 %v2103, %v2306
    %v2308 = vpop.f32.mrf.mxu0
    %2309 = vdwg.mxu0
    %2310 = vmatpush.bf16.msra.mxu0 0
    %2311 = vmatpush.bf16.msra.mxu0 0
    %2312 = vmatpush.bf16.msra.mxu0 0
    %2313 = vmatpush.bf16.msra.mxu0 0
    %2314 = vmatpush.bf16.msra.mxu0 0
    %2315 = vmatpush.bf16.msra.mxu0 0
    %2316 = vmatpush.bf16.msra.mxu0 %v2236
    %2317 = vmatpush.bf16.msra.mxu0 %v2233
    %2318 = vmatmul.bf16.gmra.mxu0 %v2269
    %v2319 = vpop.f32.mrf.mxu0
    %v2320 = vadd.f32 %v2307, %v2319
    %v2321 = vpop.f32.mrf.mxu0
    %2322 = vdwg.mxu0
    %2323 = vmatpush.bf16.msra.mxu0 %v2231
    %2324 = vmatpush.bf16.msra.mxu0 %v2228
    %2325 = vmatpush.bf16.msra.mxu0 %v2225
    %2326 = vmatpush.bf16.msra.mxu0 %v2222
    %2327 = vmatpush.bf16.msra.mxu0 %v2219
    %2328 = vmatpush.bf16.msra.mxu0 %v2216
    %2329 = vmatpush.bf16.msra.mxu0 %v2213
    %2330 = vmatpush.bf16.msra.mxu0 %v2210
    %2331 = vmatmul.bf16.gmra.mxu0 %v2099
    %v2332 = vpop.f32.mrf.mxu0
    %v2333 = vadd.f32 %v2104, %v2332
    %v2334 = vpop.f32.mrf.mxu0
    %2335 = vdwg.mxu0
    %2336 = vmatpush.bf16.msra.mxu0 0
    %2337 = vmatpush.bf16.msra.mxu0 0
    %2338 = vmatpush.bf16.msra.mxu0 0
    %2339 = vmatpush.bf16.msra.mxu0 0
    %2340 = vmatpush.bf16.msra.mxu0 0
    %2341 = vmatpush.bf16.msra.mxu0 0
    %2342 = vmatpush.bf16.msra.mxu0 %v2237
    %2343 = vmatpush.bf16.msra.mxu0 %v2234
    %2344 = vmatmul.bf16.gmra.mxu0 %v2269
    %v2345 = vpop.f32.mrf.mxu0
    %v2346 = vadd.f32 %v2333, %v2345
    %v2347 = vpop.f32.mrf.mxu0
    %2348 = vdwg.mxu0
    %vm2349 = vcmp.ge.f32.partialorder %v2294, 0.0
    %vm2350 = vcmp.ge.f32.partialorder %v2320, 0.0
    %vm2351 = vcmp.ge.f32.partialorder %v2346, 0.0
    %v2352 = vmul.f32 %v2294, 0.01
    %v2353 = vmul.f32 %v2320, 0.01
    %v2354 = vmul.f32 %v2346, 0.01
    %v2355 = vsel %vm2349, %v2294, %v2352
    %v2356 = vsel %vm2350, %v2320, %v2353
    %v2357 = vsel %vm2351, %v2346, %v2354
    %v2358 = vld [vmem:[%s19] sm:$0xff]
    %v2359 = vld [vmem:[%s19 + $0x8] sm:$0xff]
    %v2360 = vld [vmem:[%s19 + $0x10] sm:$0xff]
    %v2361 = vld [vmem:[%s19 + $0x18] sm:$0xff]
    %v2362 = vld [vmem:[%s19 + $0x20] sm:$0xff]
    %v2363 = vld [vmem:[%s19 + $0x28] sm:$0xff]
    %v2364 = vld [vmem:[%s19 + $0x30] sm:$0xff]
    %v2365 = vld [vmem:[%s19 + $0x38] sm:$0xff]
    %v2366 = vld [vmem:[%s19 + $0x40] sm:$0xff]
    %v2367 = vld [vmem:[%s19 + $0x48] sm:$0xff]
    %v2368 = vld [vmem:[%s19 + $0x50] sm:$0xff]
    %v2369 = vld [vmem:[%s19 + $0x58] sm:$0xff]
    %v2370 = vld [vmem:[%s19 + $0x60] sm:$0xff]
    %v2371 = vld [vmem:[%s19 + $0x68] sm:$0xff]
    %v2372 = vld [vmem:[%s19 + $0x70] sm:$0xff]
    %v2373 = vld [vmem:[%s19 + $0x78] sm:$0xff]
    %v2374 = vld [vmem:[%s19 + $0x80] sm:$0xff]
    %v2375 = vld [vmem:[%s19 + $0x88] sm:$0xff]
    %v2376 = vld [vmem:[%s19 + $0x90] sm:$0xff]
    %v2377 = vld [vmem:[%s19 + $0x98] sm:$0xff]
    %v2378 = vld [vmem:[%s19 + $0xa0] sm:$0xff]
    %v2379 = vld [vmem:[%s19 + $0xa8] sm:$0xff]
    %v2380 = vld [vmem:[%s19 + $0xb0] sm:$0xff]
    %v2381 = vld [vmem:[%s19 + $0xb8] sm:$0xff]
    %v2382 = vld [vmem:[%s19 + $0xc0] sm:$0xff]
    %v2383 = vld [vmem:[%s19 + $0xc8] sm:$0xff]
    %v2384 = vld [vmem:[%s19 + $0xd0] sm:$0xff]
    %v2385 = vld [vmem:[%s19 + $0xd8] sm:$0xff]
    %v2386 = vld [vmem:[%s19 + $0xe0] sm:$0xff]
    %v2387 = vld [vmem:[%s19 + $0xe8] sm:$0xff]
    %v2388 = vld [vmem:[%s19 + $0xf0] sm:$0xff]
    %v2389 = vld [vmem:[%s19 + $0xf8] sm:$0xff]
    %v2390 = vld [vmem:[%s19 + $0x100] sm:$0xff]
    %v2391 = vld [vmem:[%s19 + $0x108] sm:$0xff]
    %v2392 = vld [vmem:[%s19 + $0x110] sm:$0xff]
    %v2393 = vld [vmem:[%s19 + $0x118] sm:$0xff]
    %v2394 = vld [vmem:[%s19 + $0x120] sm:$0xff]
    %v2395 = vld [vmem:[%s19 + $0x128] sm:$0xff]
    %v2396 = vld [vmem:[%s19 + $0x130] sm:$0xff]
    %v2397 = vld [vmem:[%s19 + $0x138] sm:$0xff]
    %v2398 = vld [vmem:[%s1 + $0x1e] sm:$0x3]
    %v2399 = vpack.c.bf16 %v2355, %v2355
    %v2400 = vpack.c.bf16 %v2356, %v2356
    %v2401 = vpack.c.bf16 %v2357, %v2357
    %v2403 = vperm.slane %v2398, 0
    %v2404 = vperm.slane %v2398, 1
    %v2447 = vunpack.c.l.b16 %v2358
    %v2448 = vunpack.c.h.b16 %v2358
    %v2449 = vunpack.c.l.b16 %v2359
    %v2450 = vunpack.c.h.b16 %v2359
    %v2451 = vunpack.c.l.b16 %v2360
    %v2452 = vunpack.c.h.b16 %v2360
    %v2453 = vunpack.c.l.b16 %v2361
    %v2454 = vunpack.c.h.b16 %v2361
    %v2455 = vunpack.c.l.b16 %v2362
    %v2456 = vunpack.c.h.b16 %v2362
    %v2457 = vunpack.c.l.b16 %v2363
    %v2458 = vunpack.c.h.b16 %v2363
    %v2459 = vunpack.c.l.b16 %v2364
    %v2460 = vunpack.c.h.b16 %v2364
    %v2461 = vunpack.c.l.b16 %v2365
    %v2462 = vunpack.c.h.b16 %v2365
    %v2463 = vunpack.c.l.b16 %v2366
    %v2464 = vunpack.c.h.b16 %v2366
    %v2465 = vunpack.c.l.b16 %v2367
    %v2466 = vunpack.c.h.b16 %v2367
    %v2467 = vunpack.c.l.b16 %v2368
    %v2468 = vunpack.c.h.b16 %v2368
    %v2469 = vunpack.c.l.b16 %v2369
    %v2470 = vunpack.c.h.b16 %v2369
    %v2471 = vunpack.c.l.b16 %v2370
    %v2472 = vunpack.c.h.b16 %v2370
    %v2473 = vunpack.c.l.b16 %v2371
    %v2474 = vunpack.c.h.b16 %v2371
    %v2475 = vunpack.c.l.b16 %v2372
    %v2476 = vunpack.c.h.b16 %v2372
    %v2477 = vunpack.c.l.b16 %v2373
    %v2478 = vunpack.c.h.b16 %v2373
    %v2479 = vunpack.c.l.b16 %v2374
    %v2480 = vunpack.c.h.b16 %v2374
    %v2481 = vunpack.c.l.b16 %v2375
    %v2482 = vunpack.c.h.b16 %v2375
    %v2483 = vunpack.c.l.b16 %v2376
    %v2484 = vunpack.c.h.b16 %v2376
    %v2485 = vunpack.c.l.b16 %v2377
    %v2486 = vunpack.c.h.b16 %v2377
    %v2487 = vunpack.c.l.b16 %v2378
    %v2488 = vunpack.c.h.b16 %v2378
    %v2489 = vunpack.c.l.b16 %v2379
    %v2490 = vunpack.c.h.b16 %v2379
    %v2491 = vunpack.c.l.b16 %v2380
    %v2492 = vunpack.c.h.b16 %v2380
    %v2493 = vunpack.c.l.b16 %v2381
    %v2494 = vunpack.c.h.b16 %v2381
    %v2495 = vunpack.c.l.b16 %v2382
    %v2496 = vunpack.c.h.b16 %v2382
    %v2497 = vunpack.c.l.b16 %v2383
    %v2498 = vunpack.c.h.b16 %v2383
    %v2499 = vunpack.c.l.b16 %v2384
    %v2500 = vunpack.c.h.b16 %v2384
    %v2501 = vunpack.c.l.b16 %v2385
    %v2502 = vunpack.c.h.b16 %v2385
    %v2503 = vunpack.c.l.b16 %v2386
    %v2504 = vunpack.c.h.b16 %v2386
    %v2505 = vunpack.c.l.b16 %v2387
    %v2506 = vunpack.c.h.b16 %v2387
    %v2507 = vunpack.c.l.b16 %v2388
    %v2508 = vunpack.c.h.b16 %v2388
    %v2509 = vunpack.c.l.b16 %v2389
    %v2510 = vunpack.c.h.b16 %v2389
    %v2511 = vunpack.c.l.b16 %v2390
    %v2512 = vunpack.c.h.b16 %v2390
    %v2513 = vunpack.c.l.b16 %v2391
    %v2514 = vunpack.c.h.b16 %v2391
    %v2515 = vunpack.c.l.b16 %v2392
    %v2516 = vunpack.c.h.b16 %v2392
    %v2517 = vunpack.c.l.b16 %v2393
    %v2518 = vunpack.c.h.b16 %v2393
    %v2519 = vunpack.c.l.b16 %v2394
    %v2520 = vunpack.c.h.b16 %v2394
    %v2521 = vunpack.c.l.b16 %v2395
    %v2522 = vunpack.c.h.b16 %v2395
    %v2523 = vunpack.c.l.b16 %v2396
    %v2524 = vunpack.c.h.b16 %v2396
    %v2525 = vunpack.c.l.b16 %v2397
    %v2526 = vunpack.c.h.b16 %v2397
    %v2527 = vpack.c.b16 %v2449, %v2447
    %v2528 = vpack.c.b16 %v2450, %v2448
    %v2529 = vpack.c.b16 %v2453, %v2451
    %v2530 = vpack.c.b16 %v2454, %v2452
    %v2531 = vpack.c.b16 %v2457, %v2455
    %v2532 = vpack.c.b16 %v2458, %v2456
    %v2533 = vpack.c.b16 %v2461, %v2459
    %v2534 = vpack.c.b16 %v2462, %v2460
    %v2535 = vpack.c.b16 %v2465, %v2463
    %v2536 = vpack.c.b16 %v2466, %v2464
    %v2537 = vpack.c.b16 %v2469, %v2467
    %v2538 = vpack.c.b16 %v2470, %v2468
    %v2539 = vpack.c.b16 %v2473, %v2471
    %v2540 = vpack.c.b16 %v2474, %v2472
    %v2541 = vpack.c.b16 %v2477, %v2475
    %v2542 = vpack.c.b16 %v2478, %v2476
    %v2543 = vpack.c.b16 %v2481, %v2479
    %v2544 = vpack.c.b16 %v2482, %v2480
    %v2545 = vpack.c.b16 %v2485, %v2483
    %v2546 = vpack.c.b16 %v2486, %v2484
    %v2547 = vpack.c.b16 %v2489, %v2487
    %v2548 = vpack.c.b16 %v2490, %v2488
    %v2549 = vpack.c.b16 %v2493, %v2491
    %v2550 = vpack.c.b16 %v2494, %v2492
    %v2551 = vpack.c.b16 %v2497, %v2495
    %v2552 = vpack.c.b16 %v2498, %v2496
    %v2553 = vpack.c.b16 %v2501, %v2499
    %v2554 = vpack.c.b16 %v2502, %v2500
    %v2555 = vpack.c.b16 %v2505, %v2503
    %v2556 = vpack.c.b16 %v2506, %v2504
    %v2557 = vpack.c.b16 %v2509, %v2507
    %v2558 = vpack.c.b16 %v2510, %v2508
    %v2559 = vpack.c.b16 %v2513, %v2511
    %v2560 = vpack.c.b16 %v2514, %v2512
    %v2561 = vpack.c.b16 %v2517, %v2515
    %v2562 = vpack.c.b16 %v2518, %v2516
    %v2563 = vpack.c.b16 %v2521, %v2519
    %v2564 = vpack.c.b16 %v2522, %v2520
    %v2565 = vpack.c.b16 %v2525, %v2523
    %v2566 = vpack.c.b16 %v2526, %v2524
    %v2608 = vsel %vm1075, %v2401, 0
    %2610 = vmatpush.bf16.msra.mxu0 %v2541
    %2611 = vmatpush.bf16.msra.mxu0 %v2539
    %2612 = vmatpush.bf16.msra.mxu0 %v2537
    %2613 = vmatpush.bf16.msra.mxu0 %v2535
    %2614 = vmatpush.bf16.msra.mxu0 %v2533
    %2615 = vmatpush.bf16.msra.mxu0 %v2531
    %2616 = vmatpush.bf16.msra.mxu0 %v2529
    %2617 = vmatpush.bf16.msra.mxu0 %v2527
    %2618 = vmatmul.bf16.gmra.mxu0 %v2399
    %v2619 = vpop.f32.mrf.mxu0
    %v2620 = vadd.f32 %v2403, %v2619
    %v2621 = vpop.f32.mrf.mxu0
    %2622 = vdwg.mxu0
    %2623 = vmatpush.bf16.msra.mxu0 %v2557
    %2624 = vmatpush.bf16.msra.mxu0 %v2555
    %2625 = vmatpush.bf16.msra.mxu0 %v2553
    %2626 = vmatpush.bf16.msra.mxu0 %v2551
    %2627 = vmatpush.bf16.msra.mxu0 %v2549
    %2628 = vmatpush.bf16.msra.mxu0 %v2547
    %2629 = vmatpush.bf16.msra.mxu0 %v2545
    %2630 = vmatpush.bf16.msra.mxu0 %v2543
    %2631 = vmatmul.bf16.gmra.mxu0 %v2400
    %v2632 = vpop.f32.mrf.mxu0
    %v2633 = vadd.f32 %v2620, %v2632
    %v2634 = vpop.f32.mrf.mxu0
    %2635 = vdwg.mxu0
    %2636 = vmatpush.bf16.msra.mxu0 0
    %2637 = vmatpush.bf16.msra.mxu0 0
    %2638 = vmatpush.bf16.msra.mxu0 0
    %2639 = vmatpush.bf16.msra.mxu0 0
    %2640 = vmatpush.bf16.msra.mxu0 %v2565
    %2641 = vmatpush.bf16.msra.mxu0 %v2563
    %2642 = vmatpush.bf16.msra.mxu0 %v2561
    %2643 = vmatpush.bf16.msra.mxu0 %v2559
    %2644 = vmatmul.bf16.gmra.mxu0 %v2608
    %v2645 = vpop.f32.mrf.mxu0
    %v2646 = vadd.f32 %v2633, %v2645
    %v2647 = vpop.f32.mrf.mxu0
    %2648 = vdwg.mxu0
    %2649 = vmatpush.bf16.msra.mxu0 %v2542
    %2650 = vmatpush.bf16.msra.mxu0 %v2540
    %2651 = vmatpush.bf16.msra.mxu0 %v2538
    %2652 = vmatpush.bf16.msra.mxu0 %v2536
    %2653 = vmatpush.bf16.msra.mxu0 %v2534
    %2654 = vmatpush.bf16.msra.mxu0 %v2532
    %2655 = vmatpush.bf16.msra.mxu0 %v2530
    %2656 = vmatpush.bf16.msra.mxu0 %v2528
    %2657 = vmatmul.bf16.gmra.mxu0 %v2399
    %v2658 = vpop.f32.mrf.mxu0
    %v2659 = vadd.f32 %v2404, %v2658
    %v2660 = vpop.f32.mrf.mxu0
    %2661 = vdwg.mxu0
    %2662 = vmatpush.bf16.msra.mxu0 %v2558
    %2663 = vmatpush.bf16.msra.mxu0 %v2556
    %2664 = vmatpush.bf16.msra.mxu0 %v2554
    %2665 = vmatpush.bf16.msra.mxu0 %v2552
    %2666 = vmatpush.bf16.msra.mxu0 %v2550
    %2667 = vmatpush.bf16.msra.mxu0 %v2548
    %2668 = vmatpush.bf16.msra.mxu0 %v2546
    %2669 = vmatpush.bf16.msra.mxu0 %v2544
    %2670 = vmatmul.bf16.gmra.mxu0 %v2400
    %v2671 = vpop.f32.mrf.mxu0
    %v2672 = vadd.f32 %v2659, %v2671
    %v2673 = vpop.f32.mrf.mxu0
    %2674 = vdwg.mxu0
    %2675 = vmatpush.bf16.msra.mxu0 0
    %2676 = vmatpush.bf16.msra.mxu0 0
    %2677 = vmatpush.bf16.msra.mxu0 0
    %2678 = vmatpush.bf16.msra.mxu0 0
    %2679 = vmatpush.bf16.msra.mxu0 %v2566
    %2680 = vmatpush.bf16.msra.mxu0 %v2564
    %2681 = vmatpush.bf16.msra.mxu0 %v2562
    %2682 = vmatpush.bf16.msra.mxu0 %v2560
    %2683 = vmatmul.bf16.gmra.mxu0 %v2608
    %v2684 = vpop.f32.mrf.mxu0
    %v2685 = vadd.f32 %v2672, %v2684
    %v2686 = vpop.f32.mrf.mxu0
    %2687 = vdwg.mxu0
    %vm2688 = vcmp.ge.f32.partialorder %v2646, 0.0
    %vm2689 = vcmp.ge.f32.partialorder %v2685, 0.0
    %v2690 = vmul.f32 %v2646, 0.01
    %v2691 = vmul.f32 %v2685, 0.01
    %v2692 = vsel %vm2688, %v2646, %v2690
    %v2693 = vsel %vm2689, %v2685, %v2691
    %v2694 = vld [vmem:[%s20] sm:$0xf]
    %v2695 = vld [vmem:[%s20 + $0x4] sm:$0xf]
    %v2696 = vld [vmem:[%s20 + $0x8] sm:$0xf]
    %v2697 = vld [vmem:[%s20 + $0xc] sm:$0xf]
    %v2698 = vld [vmem:[%s20 + $0x10] sm:$0xf]
    %v2699 = vld [vmem:[%s20 + $0x14] sm:$0xf]
    %v2700 = vld [vmem:[%s20 + $0x18] sm:$0xf]
    %v2701 = vld [vmem:[%s20 + $0x1c] sm:$0xf]
    %v2702 = vld [vmem:[%s20 + $0x20] sm:$0xf]
    %v2703 = vld [vmem:[%s20 + $0x24] sm:$0xf]
    %v2704 = vld [vmem:[%s20 + $0x28] sm:$0xf]
    %v2705 = vld [vmem:[%s20 + $0x2c] sm:$0xf]
    %v2706 = vld [vmem:[%s20 + $0x30] sm:$0xf]
    %v2707 = vld [vmem:[%s20 + $0x34] sm:$0xf]
    %v2708 = vld [vmem:[%s20 + $0x38] sm:$0xf]
    %v2709 = vld [vmem:[%s20 + $0x3c] sm:$0xf]
    %v2710 = vld [vmem:[%s20 + $0x40] sm:$0xf]
    %v2711 = vld [vmem:[%s20 + $0x44] sm:$0xf]
    %v2712 = vld [vmem:[%s20 + $0x48] sm:$0xf]
    %v2713 = vld [vmem:[%s20 + $0x4c] sm:$0xf]
    %v2714 = vld [vmem:[%s1 + $0x20] sm:$0x1]
    %v2715 = vpack.c.bf16 %v2692, %v2692
    %v2716 = vpack.c.bf16 %v2693, %v2693
    %v2718 = vperm.slane %v2714, 0
    %v2740 = vunpack.c.l.b16 %v2694
    %v2741 = vunpack.c.l.b16 %v2695
    %v2742 = vunpack.c.l.b16 %v2696
    %v2743 = vunpack.c.l.b16 %v2697
    %v2744 = vunpack.c.l.b16 %v2698
    %v2745 = vunpack.c.l.b16 %v2699
    %v2746 = vunpack.c.l.b16 %v2700
    %v2747 = vunpack.c.l.b16 %v2701
    %v2748 = vunpack.c.l.b16 %v2702
    %v2749 = vunpack.c.l.b16 %v2703
    %v2750 = vunpack.c.l.b16 %v2704
    %v2751 = vunpack.c.l.b16 %v2705
    %v2752 = vunpack.c.l.b16 %v2706
    %v2753 = vunpack.c.l.b16 %v2707
    %v2754 = vunpack.c.l.b16 %v2708
    %v2755 = vunpack.c.l.b16 %v2709
    %v2756 = vunpack.c.l.b16 %v2710
    %v2757 = vunpack.c.l.b16 %v2711
    %v2758 = vunpack.c.l.b16 %v2712
    %v2759 = vunpack.c.l.b16 %v2713
    %v2760 = vpack.c.b16 %v2741, %v2740
    %v2761 = vpack.c.b16 %v2743, %v2742
    %v2762 = vpack.c.b16 %v2745, %v2744
    %v2763 = vpack.c.b16 %v2747, %v2746
    %v2764 = vpack.c.b16 %v2749, %v2748
    %v2765 = vpack.c.b16 %v2751, %v2750
    %v2766 = vpack.c.b16 %v2753, %v2752
    %v2767 = vpack.c.b16 %v2755, %v2754
    %v2768 = vpack.c.b16 %v2757, %v2756
    %v2769 = vpack.c.b16 %v2759, %v2758
    %v2781 = vsel %vm213, %v2716, 0
    %2783 = vmatpush.bf16.msra.mxu0 %v2767
    %2784 = vmatpush.bf16.msra.mxu0 %v2766
    %2785 = vmatpush.bf16.msra.mxu0 %v2765
    %2786 = vmatpush.bf16.msra.mxu0 %v2764
    %2787 = vmatpush.bf16.msra.mxu0 %v2763
    %2788 = vmatpush.bf16.msra.mxu0 %v2762
    %2789 = vmatpush.bf16.msra.mxu0 %v2761
    %2790 = vmatpush.bf16.msra.mxu0 %v2760
    %2791 = vmatmul.bf16.gmra.mxu0 %v2715
    %v2792 = vpop.f32.mrf.mxu0
    %v2793 = vadd.f32 %v2718, %v2792
    %v2794 = vpop.f32.mrf.mxu0
    %2795 = vdwg.mxu0
    %2796 = vmatpush.bf16.msra.mxu0 0
    %2797 = vmatpush.bf16.msra.mxu0 0
    %2798 = vmatpush.bf16.msra.mxu0 0
    %2799 = vmatpush.bf16.msra.mxu0 0
    %2800 = vmatpush.bf16.msra.mxu0 0
    %2801 = vmatpush.bf16.msra.mxu0 0
    %2802 = vmatpush.bf16.msra.mxu0 %v2769
    %2803 = vmatpush.bf16.msra.mxu0 %v2768
    %2804 = vmatmul.bf16.gmra.mxu0 %v2781
    %v2805 = vpop.f32.mrf.mxu0
    %v2806 = vadd.f32 %v2793, %v2805
    %v2807 = vpop.f32.mrf.mxu0
    %2808 = vdwg.mxu0
    %vm2809 = vcmp.ge.f32.partialorder %v2806, 0.0
    %v2810 = vmul.f32 %v2806, 0.01
    %v2811 = vsel %vm2809, %v2806, %v2810
    %2812 = vst.msk [vmem:[#allocation2] sm:$0xff] %vm83, %v2811
    // Predicated region
    $region86: #{_fused_call.1} parent=1 // pred_check
      _
    $region87: #{_fused_call.1} parent=1 // pred_check_branch
      %2814 = sbr.rel (0) target = $region89
    $region88: #{_fused_call.1} parent=1 // pred_region
      %2816 = vsyncadd [#allocation3], 0
      %s2818 = sshll.u32 [#allocation2], 4
      %s2819 = int_to_ptr.vmem [resolvable:$true] %s2818
      %s2820 = sshll.u32 %s21, 4
      %s2821 = int_to_ptr.hbm [resolvable:$true] %s2820
      %2823 = dma.vmem_to_hbm [thread:$0]  %s2819, 128, %s2821, [#allocation3]
    $region89: #{_fused_call.1} parent=1 // pred_fallthru
      _
    // Predicated region
    $region90: #{_fused_call.1} parent=1 // pred_check
      _
    $region91: #{_fused_call.1} parent=1 // pred_check_branch
      %2825 = sbr.rel (0) target = $region93
    $region92: #{_fused_call.1} parent=1 // pred_region
      %2827 = dma.done [#allocation3], 128
    $region93: #{_fused_call.1} parent=1 // pred_fallthru
      _
    %2828 = vsyncpa [#allocation3], 1

</llo_original>
